<compile_context>
chip_gen: v6e
topology: v6e:2x2x1
jax: 0.10.0
libtpu: 0.0.40
codegen_flags: <defaults>
</compile_context>

<pallas_src>
import numpy as np
import jax
import jax.numpy as jnp
from jax import lax
from jax.experimental import pallas as pl
from jax.experimental.pallas import tpu as pltpu

FT_SIZE = 19      # len(feature_index) in the reference module
F_PAD = 32        # feature dim padded to a multiple of the sublane tile
HIDDEN = 32


def lstm_dense_kernel(x_ref,      # (T*B, F_PAD)   inputs, time-major, batch-padded
                      w_ref,      # (64, 256)      LSTM weight slab
                      d_ref,      # (64, 128)      dense weights + biases + gate constants
                      s_ref,      # (4*B, H)       [h0_l0; c0_l0; h0_l1; c0_l1]
                      out_ref):   # (B, 128)       lane-dense output (cols 3.. are zero)
    H = HIDDEN
    G = 4 * H
    B = out_ref.shape[0]
    T = x_ref.shape[0] // B

    # --- LSTM weight slab (one DMA), all slices on (8,128) tile boundaries ---
    #   rows 0:H   = [Whh0^T | Wih1^T]            (H, 2G)
    #   rows H:2H  = [Whh1^T | Wih0^T zero-padded] (H, G) | (F_PAD, G)
    w0big = w_ref[0:H, :]                 # (H, 2G)  fused per-step weight
    whh1 = w_ref[H:2 * H, 0:G]            # (H, G)
    wih0 = w_ref[H:2 * H, G:2 * G]        # (F_PAD, G)

    # --- biases / per-lane gate constants (hoisted broadcasts: done once) ---
    b0 = d_ref[56:57, :]                                  # (1, G)
    b1 = jnp.broadcast_to(d_ref[57:58, :], (B, G))        # (B, G)
    sa = jnp.broadcast_to(d_ref[61:62, :], (B, G))        # tanh scale: 0.5 (i,f,o) / 1.0 (g)
    ofs = jnp.broadcast_to(d_ref[62:63, :], (B, G))       # offset:     0.5 (i,f,o) / 0.0 (g)

    # --- initial states ---
    h0 = s_ref[0:B, :]
    c0 = s_ref[B:2 * B, :]
    h1 = s_ref[2 * B:3 * B, :]
    c1 = s_ref[3 * B:4 * B, :]

    # Hoisted layer-0 input projection + fused bias: no time dependence, so it is
    # completely off the serial per-step critical path.
    xproj = jnp.dot(x_ref[...], wih0,
                    preferred_element_type=jnp.float32) + b0          # (T*B, G)

    def gates_to_hc(g, c):
        # One full-vreg tanh implements all four gate nonlinearities at once:
        #   sigmoid lanes (i,f,o):  0.5*tanh(0.5*x) + 0.5   (exact sigmoid)
        #   tanh lanes    (g):      1.0*tanh(1.0*x) + 0.0
        act = sa * jnp.tanh(sa * g) + ofs                  # (B, G) = [i | f | g | o]
        i = act[:, 0 * H:1 * H]
        f = act[:, 1 * H:2 * H]
        gg = act[:, 2 * H:3 * H]
        o = act[:, 3 * H:4 * H]
        c_new = f * c + i * gg
        h_new = o * jnp.tanh(c_new)
        return h_new, c_new

    # Prime layer-0's recurrent projection for t=0 (reuses the fused weight slab;
    # the unused upper 128 columns cost nothing extra on a 256-wide MXU).
    rec0 = jnp.dot(h0, w0big, preferred_element_type=jnp.float32)[:, 0:G]

    # T is a small compile-time constant: fully unrolled recurrence.
    for t in range(T):
        # Uses h1_{t-1}: independent of this step's layer-0 gates -> pipelines on the MXU.
        rec1 = jnp.dot(h1, whh1, preferred_element_type=jnp.float32)  # (B, G)
        # layer 0, step t
        h0, c0 = gates_to_hc(xproj[t * B:(t + 1) * B, :] + rec0, c0)
        # Single fused 256-wide MXU push: [h0_t @ Whh0^T | h0_t @ Wih1^T]
        big = jnp.dot(h0, w0big, preferred_element_type=jnp.float32)  # (B, 2G)
        rec0 = big[:, 0:G]                 # layer-0 recurrent term for step t+1
        # layer 1, step t
        h1, c1 = gates_to_hc(big[:, G:2 * G] + rec1 + b1, c1)

    # --- dense head (Dropout(0.5) is the identity at inference) ---
    wd1 = d_ref[0:32, 0:16]
    wd2 = d_ref[32:48, 0:8]
    wd3 = d_ref[48:56, :]                  # (8, 128): cols 3.. zero -> lane-dense output
    bd1 = d_ref[58:59, 0:16]
    bd2 = d_ref[59:60, 0:8]
    bd3 = d_ref[60:61, :]                  # (1, 128)

    z = jnp.maximum(jnp.dot(h1, wd1, preferred_element_type=jnp.float32) + bd1, 0.0)
    z = jnp.maximum(jnp.dot(z, wd2, preferred_element_type=jnp.float32) + bd2, 0.0)
    out_ref[...] = jnp.dot(z, wd3, preferred_element_type=jnp.float32) + bd3


def prepare_params(params):
    """One-time weight preprocessing: build the two constant operand slabs."""
    H = HIDDEN
    G = 4 * H

    def f32(a):
        return jnp.asarray(a, jnp.float32)

    whh0_t = f32(params["weight_hh_l0"]).T            # (H, G)
    wih1_t = f32(params["weight_ih_l1"]).T            # (H, G)
    whh1_t = f32(params["weight_hh_l1"]).T            # (H, G)
    wih0_t = f32(params["weight_ih_l0"]).T            # (FT_SIZE, G)
    wih0_pad = jnp.zeros((F_PAD, G), jnp.float32).at[:FT_SIZE, :].set(wih0_t)

    # LSTM weight slab (64, 256)
    wslab = jnp.zeros((2 * H, 2 * G), jnp.float32)
    wslab = wslab.at[0:H, :].set(jnp.concatenate([whh0_t, wih1_t], axis=1))
    wslab = wslab.at[H:2 * H, 0:G].set(whh1_t)
    wslab = wslab.at[H:2 * H, G:2 * G].set(wih0_pad)

    # Dense weights / biases / gate constants slab (64, 128)
    b0 = (f32(params["bias_ih_l0"]) + f32(params["bias_hh_l0"]))       # (G,)
    b1 = (f32(params["bias_ih_l1"]) + f32(params["bias_hh_l1"]))       # (G,)
    wd1 = f32(params["dense1_w"]).T                                    # (32, 16)
    wd2 = f32(params["dense2_w"]).T                                    # (16, 8)
    wd3 = f32(params["dense3_w"]).T                                    # (8, 3)

    lane = np.arange(G)
    is_g = (lane >= 2 * H) & (lane < 3 * H)
    sa = np.where(is_g, 1.0, 0.5).astype(np.float32)    # tanh scale / output scale
    ofs = np.where(is_g, 0.0, 0.5).astype(np.float32)   # output offset

    dslab = jnp.zeros((64, 128), jnp.float32)
    dslab = dslab.at[0:32, 0:16].set(wd1)
    dslab = dslab.at[32:48, 0:8].set(wd2)
    dslab = dslab.at[48:56, 0:3].set(wd3)
    dslab = dslab.at[56, :].set(b0)
    dslab = dslab.at[57, :].set(b1)
    dslab = dslab.at[58, 0:16].set(f32(params["dense1_b"]))
    dslab = dslab.at[59, 0:8].set(f32(params["dense2_b"]))
    dslab = dslab.at[60, 0:3].set(f32(params["dense3_b"]))
    dslab = dslab.at[61, :].set(jnp.asarray(sa))
    dslab = dslab.at[62, :].set(jnp.asarray(ofs))

    return {"wslab": wslab, "dslab": dslab}


def _lstm_forward(x, prepped, h0_init, c0_init):
    """x: (B, T, FT_SIZE); h0_init/c0_init: (3, B, HIDDEN). Returns (B, 3)."""
    B, T, F = x.shape
    assert F == FT_SIZE
    H = HIDDEN
    G = 4 * H

    # Pad the batch up to a full sublane (multiple of 8); LSTM/dense math is
    # row-independent along batch, so padded rows never affect rows 0..B-1.
    B_pad = max(8, ((B + 7) // 8) * 8)
    pad_b = B_pad - B

    x_tbf = jnp.transpose(x, (1, 0, 2)).astype(jnp.float32)             # (T, B, F)
    x_tbf = jnp.pad(x_tbf, ((0, 0), (0, pad_b), (0, F_PAD - F)))        # (T, B_pad, F_PAD)
    x2d = x_tbf.reshape(T * B_pad, F_PAD)

    def pad_rows(s):
        s = s.astype(jnp.float32)
        return jnp.pad(s, ((0, pad_b), (0, 0)))

    # state slab (4*B_pad, H): rows are [h0_l0; c0_l0; h0_l1; c0_l1]
    sslab = jnp.concatenate(
        [pad_rows(h0_init[0]), pad_rows(c0_init[0]),
         pad_rows(h0_init[1]), pad_rows(c0_init[1])], axis=0)

    wslab = prepped["wslab"]
    dslab = prepped["dslab"]

    flops = (2 * T * B_pad * F_PAD * G                      # xproj
             + 2 * B_pad * H * 2 * G                        # priming matmul
             + T * (2 * B_pad * H * 2 * G + 2 * B_pad * H * G)   # per-step matmuls
             + 2 * B_pad * (H * 16 + 16 * 8 + 8 * 128))     # dense head
    transcendentals = 2 * T * B_pad * (G + H)
    bytes_accessed = 4 * (x2d.size + wslab.size + dslab.size + sslab.size + B_pad * 128)

    vmem = pl.BlockSpec(memory_space=pltpu.MemorySpace.VMEM)
    out = pl.pallas_call(
        lstm_dense_kernel,
        out_shape=jax.ShapeDtypeStruct((B_pad, 128), jnp.float32),
        in_specs=[vmem, vmem, vmem, vmem],
        out_specs=vmem,
        cost_estimate=pl.CostEstimate(flops=flops,
                                      transcendentals=transcendentals,
                                      bytes_accessed=bytes_accessed),
        compiler_params=pltpu.CompilerParams(vmem_limit_bytes=16 * 1024 * 1024),
    )(x2d, wslab, dslab, sslab)
    return out[:B, :3]


lstm_forward = jax.jit(_lstm_forward)


def lstm_forward_ref(x, params, h0_init, c0_init):
    """Pure-JAX reference (PyTorch LSTM gate order i, f, g, o)."""
    H = HIDDEN

    def cell(x_t, h, c, w_ih, w_hh, b_ih, b_hh):
        g = x_t @ w_ih.T + b_ih + h @ w_hh.T + b_hh
        i = jax.nn.sigmoid(g[:, 0 * H:1 * H])
        f = jax.nn.sigmoid(g[:, 1 * H:2 * H])
        gg = jnp.tanh(g[:, 2 * H:3 * H])
        o = jax.nn.sigmoid(g[:, 3 * H:4 * H])
        c_new = f * c + i * gg
        return o * jnp.tanh(c_new), c_new

    def step(carry, x_t):
        h0, c0, h1, c1 = carry
        h0, c0 = cell(x_t, h0, c0, params["weight_ih_l0"], params["weight_hh_l0"],
                      params["bias_ih_l0"], params["bias_hh_l0"])
        h1, c1 = cell(h0, h1, c1, params["weight_ih_l1"], params["weight_hh_l1"],
                      params["bias_ih_l1"], params["bias_hh_l1"])
        return (h0, c0, h1, c1), None

    init = (h0_init[0], c0_init[0], h0_init[1], c0_init[1])
    (_, _, h1, _), _ = lax.scan(step, init, jnp.transpose(x, (1, 0, 2)))

    z = jnp.maximum(h1 @ params["dense1_w"].T + params["dense1_b"], 0.0)
    z = jnp.maximum(z @ params["dense2_w"].T + params["dense2_b"], 0.0)
    return z @ params["dense3_w"].T + params["dense3_b"]


def init_params(key):
    H = HIDDEN
    keys = jax.random.split(key, 20)
    k = iter(keys)
    scale = 1.0 / np.sqrt(H)

    def u(kk, shape):
        return jax.random.uniform(kk, shape, jnp.float32, -scale, scale)

    return {
        "weight_ih_l0": u(next(k), (4 * H, FT_SIZE)),
        "weight_hh_l0": u(next(k), (4 * H, H)),
        "bias_ih_l0": u(next(k), (4 * H,)),
        "bias_hh_l0": u(next(k), (4 * H,)),
        "weight_ih_l1": u(next(k), (4 * H, H)),
        "weight_hh_l1": u(next(k), (4 * H, H)),
        "bias_ih_l1": u(next(k), (4 * H,)),
        "bias_hh_l1": u(next(k), (4 * H,)),
        # layer 2 weights exist in the PyTorch module but never affect h_n[1];
        # they are intentionally unused.
        "dense1_w": u(next(k), (16, 32)),
        "dense1_b": u(next(k), (16,)),
        "dense2_w": u(next(k), (8, 16)),
        "dense2_b": u(next(k), (8,)),
        "dense3_w": u(next(k), (3, 8)),
        "dense3_b": u(next(k), (3,)),
    }


if __name__ == "__main__":
    key = jax.random.PRNGKey(0)
    k_params, k_x, k_h0, k_c0 = jax.random.split(key, 4)

    B, T = 2, 8
    params = init_params(k_params)
    prepped = prepare_params(params)          # one-time weight prep (off per-call path)

    x = jax.random.normal(k_x, (B, T, FT_SIZE), jnp.float32)
    # The PyTorch forward draws fresh random h0/c0 each call; here they are
    # deterministic draws from the same PRNG stream.
    h0_init = jax.random.normal(k_h0, (3, B, HIDDEN), jnp.float32)
    c0_init = jax.random.normal(k_c0, (3, B, HIDDEN), jnp.float32)

    out = lstm_forward(x, prepped, h0_init, c0_init)
    out = jax.block_until_ready(out)

    ref = lstm_forward_ref(x, params, h0_init, c0_init)
    assert out.shape == (B, 3)
    np.testing.assert_allclose(np.asarray(out), np.asarray(ref), rtol=1e-4, atol=1e-4)

    print("KERNEL_OK")
</pallas_src>

<mosaic_0001>
module attributes {stable_mosaic.version = 11 : i64} {
  func.func @lstm_dense_kernel(%arg0: memref<64x32xf32, #tpu.memory_space<vmem>>, %arg1: memref<64x256xf32, #tpu.memory_space<vmem>>, %arg2: memref<64x128xf32, #tpu.memory_space<vmem>>, %arg3: memref<32x32xf32, #tpu.memory_space<vmem>>, %arg4: memref<8x128xf32, #tpu.memory_space<vmem>>) attributes {dimension_semantics = [], scalar_prefetch = 0 : i64, scratch_operands = 0 : i64, tpu.core_type = #tpu.core_type<tc>} {
    %c0 = arith.constant 0 : index
    %c0_0 = arith.constant 0 : index
    %0 = vector.load %arg1[%c0, %c0_0] : memref<64x256xf32, #tpu.memory_space<vmem>>, vector<32x256xf32>
    %c32 = arith.constant 32 : index
    %c0_1 = arith.constant 0 : index
    %1 = vector.load %arg1[%c32, %c0_1] : memref<64x256xf32, #tpu.memory_space<vmem>>, vector<32x128xf32>
    %c32_2 = arith.constant 32 : index
    %c128 = arith.constant 128 : index
    %2 = vector.load %arg1[%c32_2, %c128] : memref<64x256xf32, #tpu.memory_space<vmem>>, vector<32x128xf32>
    %c56 = arith.constant 56 : index
    %c0_3 = arith.constant 0 : index
    %3 = vector.load %arg2[%c56, %c0_3] : memref<64x128xf32, #tpu.memory_space<vmem>>, vector<1x128xf32>
    %c57 = arith.constant 57 : index
    %c0_4 = arith.constant 0 : index
    %4 = vector.load %arg2[%c57, %c0_4] : memref<64x128xf32, #tpu.memory_space<vmem>>, vector<1x128xf32>
    %5 = vector.shape_cast %4 : vector<1x128xf32> to vector<1x128xf32>
    %6 = vector.broadcast %5 : vector<1x128xf32> to vector<8x128xf32>
    %c61 = arith.constant 61 : index
    %c0_5 = arith.constant 0 : index
    %7 = vector.load %arg2[%c61, %c0_5] : memref<64x128xf32, #tpu.memory_space<vmem>>, vector<1x128xf32>
    %8 = vector.shape_cast %7 : vector<1x128xf32> to vector<1x128xf32>
    %9 = vector.broadcast %8 : vector<1x128xf32> to vector<8x128xf32>
    %c62 = arith.constant 62 : index
    %c0_6 = arith.constant 0 : index
    %10 = vector.load %arg2[%c62, %c0_6] : memref<64x128xf32, #tpu.memory_space<vmem>>, vector<1x128xf32>
    %11 = vector.shape_cast %10 : vector<1x128xf32> to vector<1x128xf32>
    %12 = vector.broadcast %11 : vector<1x128xf32> to vector<8x128xf32>
    %c0_7 = arith.constant 0 : index
    %c0_8 = arith.constant 0 : index
    %13 = vector.load %arg3[%c0_7, %c0_8] : memref<32x32xf32, #tpu.memory_space<vmem>>, vector<8x32xf32>
    %c8 = arith.constant 8 : index
    %c0_9 = arith.constant 0 : index
    %14 = vector.load %arg3[%c8, %c0_9] : memref<32x32xf32, #tpu.memory_space<vmem>>, vector<8x32xf32>
    %c16 = arith.constant 16 : index
    %c0_10 = arith.constant 0 : index
    %15 = vector.load %arg3[%c16, %c0_10] : memref<32x32xf32, #tpu.memory_space<vmem>>, vector<8x32xf32>
    %c24 = arith.constant 24 : index
    %c0_11 = arith.constant 0 : index
    %16 = vector.load %arg3[%c24, %c0_11] : memref<32x32xf32, #tpu.memory_space<vmem>>, vector<8x32xf32>
    %c0_12 = arith.constant 0 : index
    %c0_13 = arith.constant 0 : index
    %17 = vector.load %arg0[%c0_12, %c0_13] : memref<64x32xf32, #tpu.memory_space<vmem>>, vector<64x32xf32>
    %cst = arith.constant dense<0.000000e+00> : vector<64x128xf32>
    %18 = tpu.matmul %17, %2, %cst {dimension_numbers = #tpu.dot_dimension_numbers<[1], [0], [0], [1], [0, 0, 1, 1], [], []>} : vector<64x32xf32>, vector<32x128xf32>, vector<64x128xf32> -> vector<64x128xf32>
    %19 = vector.broadcast %3 : vector<1x128xf32> to vector<64x128xf32>
    %20 = arith.addf %18, %19 : vector<64x128xf32>
    %cst_14 = arith.constant dense<0.000000e+00> : vector<8x256xf32>
    %21 = tpu.matmul %13, %0, %cst_14 {dimension_numbers = #tpu.dot_dimension_numbers<[1], [0], [0], [1], [0, 0, 1, 1], [], []>} : vector<8x32xf32>, vector<32x256xf32>, vector<8x256xf32> -> vector<8x256xf32>
    %22 = vector.extract_strided_slice %21 {offsets = [0, 0], sizes = [8, 128], strides = [1, 1]} : vector<8x256xf32> to vector<8x128xf32>
    %cst_15 = arith.constant dense<0.000000e+00> : vector<8x128xf32>
    %23 = tpu.matmul %15, %1, %cst_15 {dimension_numbers = #tpu.dot_dimension_numbers<[1], [0], [0], [1], [0, 0, 1, 1], [], []>} : vector<8x32xf32>, vector<32x128xf32>, vector<8x128xf32> -> vector<8x128xf32>
    %24 = vector.extract_strided_slice %20 {offsets = [0, 0], sizes = [8, 128], strides = [1, 1]} : vector<64x128xf32> to vector<8x128xf32>
    %25 = arith.addf %24, %22 : vector<8x128xf32>
    %26 = arith.mulf %9, %25 : vector<8x128xf32>
    %27 = math.tanh %26 : vector<8x128xf32>
    %28 = arith.mulf %9, %27 : vector<8x128xf32>
    %29 = arith.addf %28, %12 : vector<8x128xf32>
    %30 = vector.extract_strided_slice %29 {offsets = [0, 0], sizes = [8, 32], strides = [1, 1]} : vector<8x128xf32> to vector<8x32xf32>
    %31 = vector.extract_strided_slice %29 {offsets = [0, 32], sizes = [8, 32], strides = [1, 1]} : vector<8x128xf32> to vector<8x32xf32>
    %32 = vector.extract_strided_slice %29 {offsets = [0, 64], sizes = [8, 32], strides = [1, 1]} : vector<8x128xf32> to vector<8x32xf32>
    %33 = vector.extract_strided_slice %29 {offsets = [0, 96], sizes = [8, 32], strides = [1, 1]} : vector<8x128xf32> to vector<8x32xf32>
    %34 = arith.mulf %31, %14 : vector<8x32xf32>
    %35 = arith.mulf %30, %32 : vector<8x32xf32>
    %36 = arith.addf %34, %35 : vector<8x32xf32>
    %37 = math.tanh %36 : vector<8x32xf32>
    %38 = arith.mulf %33, %37 : vector<8x32xf32>
    %cst_16 = arith.constant dense<0.000000e+00> : vector<8x256xf32>
    %39 = tpu.matmul %38, %0, %cst_16 {dimension_numbers = #tpu.dot_dimension_numbers<[1], [0], [0], [1], [0, 0, 1, 1], [], []>} : vector<8x32xf32>, vector<32x256xf32>, vector<8x256xf32> -> vector<8x256xf32>
    %40 = vector.extract_strided_slice %39 {offsets = [0, 0], sizes = [8, 128], strides = [1, 1]} : vector<8x256xf32> to vector<8x128xf32>
    %41 = vector.extract_strided_slice %39 {offsets = [0, 128], sizes = [8, 128], strides = [1, 1]} : vector<8x256xf32> to vector<8x128xf32>
    %42 = arith.addf %41, %23 : vector<8x128xf32>
    %43 = arith.addf %42, %6 : vector<8x128xf32>
    %44 = arith.mulf %9, %43 : vector<8x128xf32>
    %45 = math.tanh %44 : vector<8x128xf32>
    %46 = arith.mulf %9, %45 : vector<8x128xf32>
    %47 = arith.addf %46, %12 : vector<8x128xf32>
    %48 = vector.extract_strided_slice %47 {offsets = [0, 0], sizes = [8, 32], strides = [1, 1]} : vector<8x128xf32> to vector<8x32xf32>
    %49 = vector.extract_strided_slice %47 {offsets = [0, 32], sizes = [8, 32], strides = [1, 1]} : vector<8x128xf32> to vector<8x32xf32>
    %50 = vector.extract_strided_slice %47 {offsets = [0, 64], sizes = [8, 32], strides = [1, 1]} : vector<8x128xf32> to vector<8x32xf32>
    %51 = vector.extract_strided_slice %47 {offsets = [0, 96], sizes = [8, 32], strides = [1, 1]} : vector<8x128xf32> to vector<8x32xf32>
    %52 = arith.mulf %49, %16 : vector<8x32xf32>
    %53 = arith.mulf %48, %50 : vector<8x32xf32>
    %54 = arith.addf %52, %53 : vector<8x32xf32>
    %55 = math.tanh %54 : vector<8x32xf32>
    %56 = arith.mulf %51, %55 : vector<8x32xf32>
    %cst_17 = arith.constant dense<0.000000e+00> : vector<8x128xf32>
    %57 = tpu.matmul %56, %1, %cst_17 {dimension_numbers = #tpu.dot_dimension_numbers<[1], [0], [0], [1], [0, 0, 1, 1], [], []>} : vector<8x32xf32>, vector<32x128xf32>, vector<8x128xf32> -> vector<8x128xf32>
    %58 = vector.extract_strided_slice %20 {offsets = [8, 0], sizes = [8, 128], strides = [1, 1]} : vector<64x128xf32> to vector<8x128xf32>
    %59 = arith.addf %58, %40 : vector<8x128xf32>
    %60 = arith.mulf %9, %59 : vector<8x128xf32>
    %61 = math.tanh %60 : vector<8x128xf32>
    %62 = arith.mulf %9, %61 : vector<8x128xf32>
    %63 = arith.addf %62, %12 : vector<8x128xf32>
    %64 = vector.extract_strided_slice %63 {offsets = [0, 0], sizes = [8, 32], strides = [1, 1]} : vector<8x128xf32> to vector<8x32xf32>
    %65 = vector.extract_strided_slice %63 {offsets = [0, 32], sizes = [8, 32], strides = [1, 1]} : vector<8x128xf32> to vector<8x32xf32>
    %66 = vector.extract_strided_slice %63 {offsets = [0, 64], sizes = [8, 32], strides = [1, 1]} : vector<8x128xf32> to vector<8x32xf32>
    %67 = vector.extract_strided_slice %63 {offsets = [0, 96], sizes = [8, 32], strides = [1, 1]} : vector<8x128xf32> to vector<8x32xf32>
    %68 = arith.mulf %65, %36 : vector<8x32xf32>
    %69 = arith.mulf %64, %66 : vector<8x32xf32>
    %70 = arith.addf %68, %69 : vector<8x32xf32>
    %71 = math.tanh %70 : vector<8x32xf32>
    %72 = arith.mulf %67, %71 : vector<8x32xf32>
    %cst_18 = arith.constant dense<0.000000e+00> : vector<8x256xf32>
    %73 = tpu.matmul %72, %0, %cst_18 {dimension_numbers = #tpu.dot_dimension_numbers<[1], [0], [0], [1], [0, 0, 1, 1], [], []>} : vector<8x32xf32>, vector<32x256xf32>, vector<8x256xf32> -> vector<8x256xf32>
    %74 = vector.extract_strided_slice %73 {offsets = [0, 0], sizes = [8, 128], strides = [1, 1]} : vector<8x256xf32> to vector<8x128xf32>
    %75 = vector.extract_strided_slice %73 {offsets = [0, 128], sizes = [8, 128], strides = [1, 1]} : vector<8x256xf32> to vector<8x128xf32>
    %76 = arith.addf %75, %57 : vector<8x128xf32>
    %77 = arith.addf %76, %6 : vector<8x128xf32>
    %78 = arith.mulf %9, %77 : vector<8x128xf32>
    %79 = math.tanh %78 : vector<8x128xf32>
    %80 = arith.mulf %9, %79 : vector<8x128xf32>
    %81 = arith.addf %80, %12 : vector<8x128xf32>
    %82 = vector.extract_strided_slice %81 {offsets = [0, 0], sizes = [8, 32], strides = [1, 1]} : vector<8x128xf32> to vector<8x32xf32>
    %83 = vector.extract_strided_slice %81 {offsets = [0, 32], sizes = [8, 32], strides = [1, 1]} : vector<8x128xf32> to vector<8x32xf32>
    %84 = vector.extract_strided_slice %81 {offsets = [0, 64], sizes = [8, 32], strides = [1, 1]} : vector<8x128xf32> to vector<8x32xf32>
    %85 = vector.extract_strided_slice %81 {offsets = [0, 96], sizes = [8, 32], strides = [1, 1]} : vector<8x128xf32> to vector<8x32xf32>
    %86 = arith.mulf %83, %54 : vector<8x32xf32>
    %87 = arith.mulf %82, %84 : vector<8x32xf32>
    %88 = arith.addf %86, %87 : vector<8x32xf32>
    %89 = math.tanh %88 : vector<8x32xf32>
    %90 = arith.mulf %85, %89 : vector<8x32xf32>
    %cst_19 = arith.constant dense<0.000000e+00> : vector<8x128xf32>
    %91 = tpu.matmul %90, %1, %cst_19 {dimension_numbers = #tpu.dot_dimension_numbers<[1], [0], [0], [1], [0, 0, 1, 1], [], []>} : vector<8x32xf32>, vector<32x128xf32>, vector<8x128xf32> -> vector<8x128xf32>
    %92 = vector.extract_strided_slice %20 {offsets = [16, 0], sizes = [8, 128], strides = [1, 1]} : vector<64x128xf32> to vector<8x128xf32>
    %93 = arith.addf %92, %74 : vector<8x128xf32>
    %94 = arith.mulf %9, %93 : vector<8x128xf32>
    %95 = math.tanh %94 : vector<8x128xf32>
    %96 = arith.mulf %9, %95 : vector<8x128xf32>
    %97 = arith.addf %96, %12 : vector<8x128xf32>
    %98 = vector.extract_strided_slice %97 {offsets = [0, 0], sizes = [8, 32], strides = [1, 1]} : vector<8x128xf32> to vector<8x32xf32>
    %99 = vector.extract_strided_slice %97 {offsets = [0, 32], sizes = [8, 32], strides = [1, 1]} : vector<8x128xf32> to vector<8x32xf32>
    %100 = vector.extract_strided_slice %97 {offsets = [0, 64], sizes = [8, 32], strides = [1, 1]} : vector<8x128xf32> to vector<8x32xf32>
    %101 = vector.extract_strided_slice %97 {offsets = [0, 96], sizes = [8, 32], strides = [1, 1]} : vector<8x128xf32> to vector<8x32xf32>
    %102 = arith.mulf %99, %70 : vector<8x32xf32>
    %103 = arith.mulf %98, %100 : vector<8x32xf32>
    %104 = arith.addf %102, %103 : vector<8x32xf32>
    %105 = math.tanh %104 : vector<8x32xf32>
    %106 = arith.mulf %101, %105 : vector<8x32xf32>
    %cst_20 = arith.constant dense<0.000000e+00> : vector<8x256xf32>
    %107 = tpu.matmul %106, %0, %cst_20 {dimension_numbers = #tpu.dot_dimension_numbers<[1], [0], [0], [1], [0, 0, 1, 1], [], []>} : vector<8x32xf32>, vector<32x256xf32>, vector<8x256xf32> -> vector<8x256xf32>
    %108 = vector.extract_strided_slice %107 {offsets = [0, 0], sizes = [8, 128], strides = [1, 1]} : vector<8x256xf32> to vector<8x128xf32>
    %109 = vector.extract_strided_slice %107 {offsets = [0, 128], sizes = [8, 128], strides = [1, 1]} : vector<8x256xf32> to vector<8x128xf32>
    %110 = arith.addf %109, %91 : vector<8x128xf32>
    %111 = arith.addf %110, %6 : vector<8x128xf32>
    %112 = arith.mulf %9, %111 : vector<8x128xf32>
    %113 = math.tanh %112 : vector<8x128xf32>
    %114 = arith.mulf %9, %113 : vector<8x128xf32>
    %115 = arith.addf %114, %12 : vector<8x128xf32>
    %116 = vector.extract_strided_slice %115 {offsets = [0, 0], sizes = [8, 32], strides = [1, 1]} : vector<8x128xf32> to vector<8x32xf32>
    %117 = vector.extract_strided_slice %115 {offsets = [0, 32], sizes = [8, 32], strides = [1, 1]} : vector<8x128xf32> to vector<8x32xf32>
    %118 = vector.extract_strided_slice %115 {offsets = [0, 64], sizes = [8, 32], strides = [1, 1]} : vector<8x128xf32> to vector<8x32xf32>
    %119 = vector.extract_strided_slice %115 {offsets = [0, 96], sizes = [8, 32], strides = [1, 1]} : vector<8x128xf32> to vector<8x32xf32>
    %120 = arith.mulf %117, %88 : vector<8x32xf32>
    %121 = arith.mulf %116, %118 : vector<8x32xf32>
    %122 = arith.addf %120, %121 : vector<8x32xf32>
    %123 = math.tanh %122 : vector<8x32xf32>
    %124 = arith.mulf %119, %123 : vector<8x32xf32>
    %cst_21 = arith.constant dense<0.000000e+00> : vector<8x128xf32>
    %125 = tpu.matmul %124, %1, %cst_21 {dimension_numbers = #tpu.dot_dimension_numbers<[1], [0], [0], [1], [0, 0, 1, 1], [], []>} : vector<8x32xf32>, vector<32x128xf32>, vector<8x128xf32> -> vector<8x128xf32>
    %126 = vector.extract_strided_slice %20 {offsets = [24, 0], sizes = [8, 128], strides = [1, 1]} : vector<64x128xf32> to vector<8x128xf32>
    %127 = arith.addf %126, %108 : vector<8x128xf32>
    %128 = arith.mulf %9, %127 : vector<8x128xf32>
    %129 = math.tanh %128 : vector<8x128xf32>
    %130 = arith.mulf %9, %129 : vector<8x128xf32>
    %131 = arith.addf %130, %12 : vector<8x128xf32>
    %132 = vector.extract_strided_slice %131 {offsets = [0, 0], sizes = [8, 32], strides = [1, 1]} : vector<8x128xf32> to vector<8x32xf32>
    %133 = vector.extract_strided_slice %131 {offsets = [0, 32], sizes = [8, 32], strides = [1, 1]} : vector<8x128xf32> to vector<8x32xf32>
    %134 = vector.extract_strided_slice %131 {offsets = [0, 64], sizes = [8, 32], strides = [1, 1]} : vector<8x128xf32> to vector<8x32xf32>
    %135 = vector.extract_strided_slice %131 {offsets = [0, 96], sizes = [8, 32], strides = [1, 1]} : vector<8x128xf32> to vector<8x32xf32>
    %136 = arith.mulf %133, %104 : vector<8x32xf32>
    %137 = arith.mulf %132, %134 : vector<8x32xf32>
    %138 = arith.addf %136, %137 : vector<8x32xf32>
    %139 = math.tanh %138 : vector<8x32xf32>
    %140 = arith.mulf %135, %139 : vector<8x32xf32>
    %cst_22 = arith.constant dense<0.000000e+00> : vector<8x256xf32>
    %141 = tpu.matmul %140, %0, %cst_22 {dimension_numbers = #tpu.dot_dimension_numbers<[1], [0], [0], [1], [0, 0, 1, 1], [], []>} : vector<8x32xf32>, vector<32x256xf32>, vector<8x256xf32> -> vector<8x256xf32>
    %142 = vector.extract_strided_slice %141 {offsets = [0, 0], sizes = [8, 128], strides = [1, 1]} : vector<8x256xf32> to vector<8x128xf32>
    %143 = vector.extract_strided_slice %141 {offsets = [0, 128], sizes = [8, 128], strides = [1, 1]} : vector<8x256xf32> to vector<8x128xf32>
    %144 = arith.addf %143, %125 : vector<8x128xf32>
    %145 = arith.addf %144, %6 : vector<8x128xf32>
    %146 = arith.mulf %9, %145 : vector<8x128xf32>
    %147 = math.tanh %146 : vector<8x128xf32>
    %148 = arith.mulf %9, %147 : vector<8x128xf32>
    %149 = arith.addf %148, %12 : vector<8x128xf32>
    %150 = vector.extract_strided_slice %149 {offsets = [0, 0], sizes = [8, 32], strides = [1, 1]} : vector<8x128xf32> to vector<8x32xf32>
    %151 = vector.extract_strided_slice %149 {offsets = [0, 32], sizes = [8, 32], strides = [1, 1]} : vector<8x128xf32> to vector<8x32xf32>
    %152 = vector.extract_strided_slice %149 {offsets = [0, 64], sizes = [8, 32], strides = [1, 1]} : vector<8x128xf32> to vector<8x32xf32>
    %153 = vector.extract_strided_slice %149 {offsets = [0, 96], sizes = [8, 32], strides = [1, 1]} : vector<8x128xf32> to vector<8x32xf32>
    %154 = arith.mulf %151, %122 : vector<8x32xf32>
    %155 = arith.mulf %150, %152 : vector<8x32xf32>
    %156 = arith.addf %154, %155 : vector<8x32xf32>
    %157 = math.tanh %156 : vector<8x32xf32>
    %158 = arith.mulf %153, %157 : vector<8x32xf32>
    %cst_23 = arith.constant dense<0.000000e+00> : vector<8x128xf32>
    %159 = tpu.matmul %158, %1, %cst_23 {dimension_numbers = #tpu.dot_dimension_numbers<[1], [0], [0], [1], [0, 0, 1, 1], [], []>} : vector<8x32xf32>, vector<32x128xf32>, vector<8x128xf32> -> vector<8x128xf32>
    %160 = vector.extract_strided_slice %20 {offsets = [32, 0], sizes = [8, 128], strides = [1, 1]} : vector<64x128xf32> to vector<8x128xf32>
    %161 = arith.addf %160, %142 : vector<8x128xf32>
    %162 = arith.mulf %9, %161 : vector<8x128xf32>
    %163 = math.tanh %162 : vector<8x128xf32>
    %164 = arith.mulf %9, %163 : vector<8x128xf32>
    %165 = arith.addf %164, %12 : vector<8x128xf32>
    %166 = vector.extract_strided_slice %165 {offsets = [0, 0], sizes = [8, 32], strides = [1, 1]} : vector<8x128xf32> to vector<8x32xf32>
    %167 = vector.extract_strided_slice %165 {offsets = [0, 32], sizes = [8, 32], strides = [1, 1]} : vector<8x128xf32> to vector<8x32xf32>
    %168 = vector.extract_strided_slice %165 {offsets = [0, 64], sizes = [8, 32], strides = [1, 1]} : vector<8x128xf32> to vector<8x32xf32>
    %169 = vector.extract_strided_slice %165 {offsets = [0, 96], sizes = [8, 32], strides = [1, 1]} : vector<8x128xf32> to vector<8x32xf32>
    %170 = arith.mulf %167, %138 : vector<8x32xf32>
    %171 = arith.mulf %166, %168 : vector<8x32xf32>
    %172 = arith.addf %170, %171 : vector<8x32xf32>
    %173 = math.tanh %172 : vector<8x32xf32>
    %174 = arith.mulf %169, %173 : vector<8x32xf32>
    %cst_24 = arith.constant dense<0.000000e+00> : vector<8x256xf32>
    %175 = tpu.matmul %174, %0, %cst_24 {dimension_numbers = #tpu.dot_dimension_numbers<[1], [0], [0], [1], [0, 0, 1, 1], [], []>} : vector<8x32xf32>, vector<32x256xf32>, vector<8x256xf32> -> vector<8x256xf32>
    %176 = vector.extract_strided_slice %175 {offsets = [0, 0], sizes = [8, 128], strides = [1, 1]} : vector<8x256xf32> to vector<8x128xf32>
    %177 = vector.extract_strided_slice %175 {offsets = [0, 128], sizes = [8, 128], strides = [1, 1]} : vector<8x256xf32> to vector<8x128xf32>
    %178 = arith.addf %177, %159 : vector<8x128xf32>
    %179 = arith.addf %178, %6 : vector<8x128xf32>
    %180 = arith.mulf %9, %179 : vector<8x128xf32>
    %181 = math.tanh %180 : vector<8x128xf32>
    %182 = arith.mulf %9, %181 : vector<8x128xf32>
    %183 = arith.addf %182, %12 : vector<8x128xf32>
    %184 = vector.extract_strided_slice %183 {offsets = [0, 0], sizes = [8, 32], strides = [1, 1]} : vector<8x128xf32> to vector<8x32xf32>
    %185 = vector.extract_strided_slice %183 {offsets = [0, 32], sizes = [8, 32], strides = [1, 1]} : vector<8x128xf32> to vector<8x32xf32>
    %186 = vector.extract_strided_slice %183 {offsets = [0, 64], sizes = [8, 32], strides = [1, 1]} : vector<8x128xf32> to vector<8x32xf32>
    %187 = vector.extract_strided_slice %183 {offsets = [0, 96], sizes = [8, 32], strides = [1, 1]} : vector<8x128xf32> to vector<8x32xf32>
    %188 = arith.mulf %185, %156 : vector<8x32xf32>
    %189 = arith.mulf %184, %186 : vector<8x32xf32>
    %190 = arith.addf %188, %189 : vector<8x32xf32>
    %191 = math.tanh %190 : vector<8x32xf32>
    %192 = arith.mulf %187, %191 : vector<8x32xf32>
    %cst_25 = arith.constant dense<0.000000e+00> : vector<8x128xf32>
    %193 = tpu.matmul %192, %1, %cst_25 {dimension_numbers = #tpu.dot_dimension_numbers<[1], [0], [0], [1], [0, 0, 1, 1], [], []>} : vector<8x32xf32>, vector<32x128xf32>, vector<8x128xf32> -> vector<8x128xf32>
    %194 = vector.extract_strided_slice %20 {offsets = [40, 0], sizes = [8, 128], strides = [1, 1]} : vector<64x128xf32> to vector<8x128xf32>
    %195 = arith.addf %194, %176 : vector<8x128xf32>
    %196 = arith.mulf %9, %195 : vector<8x128xf32>
    %197 = math.tanh %196 : vector<8x128xf32>
    %198 = arith.mulf %9, %197 : vector<8x128xf32>
    %199 = arith.addf %198, %12 : vector<8x128xf32>
    %200 = vector.extract_strided_slice %199 {offsets = [0, 0], sizes = [8, 32], strides = [1, 1]} : vector<8x128xf32> to vector<8x32xf32>
    %201 = vector.extract_strided_slice %199 {offsets = [0, 32], sizes = [8, 32], strides = [1, 1]} : vector<8x128xf32> to vector<8x32xf32>
    %202 = vector.extract_strided_slice %199 {offsets = [0, 64], sizes = [8, 32], strides = [1, 1]} : vector<8x128xf32> to vector<8x32xf32>
    %203 = vector.extract_strided_slice %199 {offsets = [0, 96], sizes = [8, 32], strides = [1, 1]} : vector<8x128xf32> to vector<8x32xf32>
    %204 = arith.mulf %201, %172 : vector<8x32xf32>
    %205 = arith.mulf %200, %202 : vector<8x32xf32>
    %206 = arith.addf %204, %205 : vector<8x32xf32>
    %207 = math.tanh %206 : vector<8x32xf32>
    %208 = arith.mulf %203, %207 : vector<8x32xf32>
    %cst_26 = arith.constant dense<0.000000e+00> : vector<8x256xf32>
    %209 = tpu.matmul %208, %0, %cst_26 {dimension_numbers = #tpu.dot_dimension_numbers<[1], [0], [0], [1], [0, 0, 1, 1], [], []>} : vector<8x32xf32>, vector<32x256xf32>, vector<8x256xf32> -> vector<8x256xf32>
    %210 = vector.extract_strided_slice %209 {offsets = [0, 0], sizes = [8, 128], strides = [1, 1]} : vector<8x256xf32> to vector<8x128xf32>
    %211 = vector.extract_strided_slice %209 {offsets = [0, 128], sizes = [8, 128], strides = [1, 1]} : vector<8x256xf32> to vector<8x128xf32>
    %212 = arith.addf %211, %193 : vector<8x128xf32>
    %213 = arith.addf %212, %6 : vector<8x128xf32>
    %214 = arith.mulf %9, %213 : vector<8x128xf32>
    %215 = math.tanh %214 : vector<8x128xf32>
    %216 = arith.mulf %9, %215 : vector<8x128xf32>
    %217 = arith.addf %216, %12 : vector<8x128xf32>
    %218 = vector.extract_strided_slice %217 {offsets = [0, 0], sizes = [8, 32], strides = [1, 1]} : vector<8x128xf32> to vector<8x32xf32>
    %219 = vector.extract_strided_slice %217 {offsets = [0, 32], sizes = [8, 32], strides = [1, 1]} : vector<8x128xf32> to vector<8x32xf32>
    %220 = vector.extract_strided_slice %217 {offsets = [0, 64], sizes = [8, 32], strides = [1, 1]} : vector<8x128xf32> to vector<8x32xf32>
    %221 = vector.extract_strided_slice %217 {offsets = [0, 96], sizes = [8, 32], strides = [1, 1]} : vector<8x128xf32> to vector<8x32xf32>
    %222 = arith.mulf %219, %190 : vector<8x32xf32>
    %223 = arith.mulf %218, %220 : vector<8x32xf32>
    %224 = arith.addf %222, %223 : vector<8x32xf32>
    %225 = math.tanh %224 : vector<8x32xf32>
    %226 = arith.mulf %221, %225 : vector<8x32xf32>
    %cst_27 = arith.constant dense<0.000000e+00> : vector<8x128xf32>
    %227 = tpu.matmul %226, %1, %cst_27 {dimension_numbers = #tpu.dot_dimension_numbers<[1], [0], [0], [1], [0, 0, 1, 1], [], []>} : vector<8x32xf32>, vector<32x128xf32>, vector<8x128xf32> -> vector<8x128xf32>
    %228 = vector.extract_strided_slice %20 {offsets = [48, 0], sizes = [8, 128], strides = [1, 1]} : vector<64x128xf32> to vector<8x128xf32>
    %229 = arith.addf %228, %210 : vector<8x128xf32>
    %230 = arith.mulf %9, %229 : vector<8x128xf32>
    %231 = math.tanh %230 : vector<8x128xf32>
    %232 = arith.mulf %9, %231 : vector<8x128xf32>
    %233 = arith.addf %232, %12 : vector<8x128xf32>
    %234 = vector.extract_strided_slice %233 {offsets = [0, 0], sizes = [8, 32], strides = [1, 1]} : vector<8x128xf32> to vector<8x32xf32>
    %235 = vector.extract_strided_slice %233 {offsets = [0, 32], sizes = [8, 32], strides = [1, 1]} : vector<8x128xf32> to vector<8x32xf32>
    %236 = vector.extract_strided_slice %233 {offsets = [0, 64], sizes = [8, 32], strides = [1, 1]} : vector<8x128xf32> to vector<8x32xf32>
    %237 = vector.extract_strided_slice %233 {offsets = [0, 96], sizes = [8, 32], strides = [1, 1]} : vector<8x128xf32> to vector<8x32xf32>
    %238 = arith.mulf %235, %206 : vector<8x32xf32>
    %239 = arith.mulf %234, %236 : vector<8x32xf32>
    %240 = arith.addf %238, %239 : vector<8x32xf32>
    %241 = math.tanh %240 : vector<8x32xf32>
    %242 = arith.mulf %237, %241 : vector<8x32xf32>
    %cst_28 = arith.constant dense<0.000000e+00> : vector<8x256xf32>
    %243 = tpu.matmul %242, %0, %cst_28 {dimension_numbers = #tpu.dot_dimension_numbers<[1], [0], [0], [1], [0, 0, 1, 1], [], []>} : vector<8x32xf32>, vector<32x256xf32>, vector<8x256xf32> -> vector<8x256xf32>
    %244 = vector.extract_strided_slice %243 {offsets = [0, 0], sizes = [8, 128], strides = [1, 1]} : vector<8x256xf32> to vector<8x128xf32>
    %245 = vector.extract_strided_slice %243 {offsets = [0, 128], sizes = [8, 128], strides = [1, 1]} : vector<8x256xf32> to vector<8x128xf32>
    %246 = arith.addf %245, %227 : vector<8x128xf32>
    %247 = arith.addf %246, %6 : vector<8x128xf32>
    %248 = arith.mulf %9, %247 : vector<8x128xf32>
    %249 = math.tanh %248 : vector<8x128xf32>
    %250 = arith.mulf %9, %249 : vector<8x128xf32>
    %251 = arith.addf %250, %12 : vector<8x128xf32>
    %252 = vector.extract_strided_slice %251 {offsets = [0, 0], sizes = [8, 32], strides = [1, 1]} : vector<8x128xf32> to vector<8x32xf32>
    %253 = vector.extract_strided_slice %251 {offsets = [0, 32], sizes = [8, 32], strides = [1, 1]} : vector<8x128xf32> to vector<8x32xf32>
    %254 = vector.extract_strided_slice %251 {offsets = [0, 64], sizes = [8, 32], strides = [1, 1]} : vector<8x128xf32> to vector<8x32xf32>
    %255 = vector.extract_strided_slice %251 {offsets = [0, 96], sizes = [8, 32], strides = [1, 1]} : vector<8x128xf32> to vector<8x32xf32>
    %256 = arith.mulf %253, %224 : vector<8x32xf32>
    %257 = arith.mulf %252, %254 : vector<8x32xf32>
    %258 = arith.addf %256, %257 : vector<8x32xf32>
    %259 = math.tanh %258 : vector<8x32xf32>
    %260 = arith.mulf %255, %259 : vector<8x32xf32>
    %cst_29 = arith.constant dense<0.000000e+00> : vector<8x128xf32>
    %261 = tpu.matmul %260, %1, %cst_29 {dimension_numbers = #tpu.dot_dimension_numbers<[1], [0], [0], [1], [0, 0, 1, 1], [], []>} : vector<8x32xf32>, vector<32x128xf32>, vector<8x128xf32> -> vector<8x128xf32>
    %262 = vector.extract_strided_slice %20 {offsets = [56, 0], sizes = [8, 128], strides = [1, 1]} : vector<64x128xf32> to vector<8x128xf32>
    %263 = arith.addf %262, %244 : vector<8x128xf32>
    %264 = arith.mulf %9, %263 : vector<8x128xf32>
    %265 = math.tanh %264 : vector<8x128xf32>
    %266 = arith.mulf %9, %265 : vector<8x128xf32>
    %267 = arith.addf %266, %12 : vector<8x128xf32>
    %268 = vector.extract_strided_slice %267 {offsets = [0, 0], sizes = [8, 32], strides = [1, 1]} : vector<8x128xf32> to vector<8x32xf32>
    %269 = vector.extract_strided_slice %267 {offsets = [0, 32], sizes = [8, 32], strides = [1, 1]} : vector<8x128xf32> to vector<8x32xf32>
    %270 = vector.extract_strided_slice %267 {offsets = [0, 64], sizes = [8, 32], strides = [1, 1]} : vector<8x128xf32> to vector<8x32xf32>
    %271 = vector.extract_strided_slice %267 {offsets = [0, 96], sizes = [8, 32], strides = [1, 1]} : vector<8x128xf32> to vector<8x32xf32>
    %272 = arith.mulf %269, %240 : vector<8x32xf32>
    %273 = arith.mulf %268, %270 : vector<8x32xf32>
    %274 = arith.addf %272, %273 : vector<8x32xf32>
    %275 = math.tanh %274 : vector<8x32xf32>
    %276 = arith.mulf %271, %275 : vector<8x32xf32>
    %cst_30 = arith.constant dense<0.000000e+00> : vector<8x256xf32>
    %277 = tpu.matmul %276, %0, %cst_30 {dimension_numbers = #tpu.dot_dimension_numbers<[1], [0], [0], [1], [0, 0, 1, 1], [], []>} : vector<8x32xf32>, vector<32x256xf32>, vector<8x256xf32> -> vector<8x256xf32>
    %278 = vector.extract_strided_slice %277 {offsets = [0, 128], sizes = [8, 128], strides = [1, 1]} : vector<8x256xf32> to vector<8x128xf32>
    %279 = arith.addf %278, %261 : vector<8x128xf32>
    %280 = arith.addf %279, %6 : vector<8x128xf32>
    %281 = arith.mulf %9, %280 : vector<8x128xf32>
    %282 = math.tanh %281 : vector<8x128xf32>
    %283 = arith.mulf %9, %282 : vector<8x128xf32>
    %284 = arith.addf %283, %12 : vector<8x128xf32>
    %285 = vector.extract_strided_slice %284 {offsets = [0, 0], sizes = [8, 32], strides = [1, 1]} : vector<8x128xf32> to vector<8x32xf32>
    %286 = vector.extract_strided_slice %284 {offsets = [0, 32], sizes = [8, 32], strides = [1, 1]} : vector<8x128xf32> to vector<8x32xf32>
    %287 = vector.extract_strided_slice %284 {offsets = [0, 64], sizes = [8, 32], strides = [1, 1]} : vector<8x128xf32> to vector<8x32xf32>
    %288 = vector.extract_strided_slice %284 {offsets = [0, 96], sizes = [8, 32], strides = [1, 1]} : vector<8x128xf32> to vector<8x32xf32>
    %289 = arith.mulf %286, %258 : vector<8x32xf32>
    %290 = arith.mulf %285, %287 : vector<8x32xf32>
    %291 = arith.addf %289, %290 : vector<8x32xf32>
    %292 = math.tanh %291 : vector<8x32xf32>
    %293 = arith.mulf %288, %292 : vector<8x32xf32>
    %c0_31 = arith.constant 0 : index
    %c0_32 = arith.constant 0 : index
    %294 = vector.load %arg2[%c0_31, %c0_32] : memref<64x128xf32, #tpu.memory_space<vmem>>, vector<32x16xf32>
    %c32_33 = arith.constant 32 : index
    %c0_34 = arith.constant 0 : index
    %295 = vector.load %arg2[%c32_33, %c0_34] : memref<64x128xf32, #tpu.memory_space<vmem>>, vector<16x8xf32>
    %c48 = arith.constant 48 : index
    %c0_35 = arith.constant 0 : index
    %296 = vector.load %arg2[%c48, %c0_35] : memref<64x128xf32, #tpu.memory_space<vmem>>, vector<8x128xf32>
    %c58 = arith.constant 58 : index
    %c0_36 = arith.constant 0 : index
    %297 = vector.load %arg2[%c58, %c0_36] : memref<64x128xf32, #tpu.memory_space<vmem>>, vector<1x16xf32>
    %c59 = arith.constant 59 : index
    %c0_37 = arith.constant 0 : index
    %298 = vector.load %arg2[%c59, %c0_37] : memref<64x128xf32, #tpu.memory_space<vmem>>, vector<1x8xf32>
    %c60 = arith.constant 60 : index
    %c0_38 = arith.constant 0 : index
    %299 = vector.load %arg2[%c60, %c0_38] : memref<64x128xf32, #tpu.memory_space<vmem>>, vector<1x128xf32>
    %cst_39 = arith.constant dense<0.000000e+00> : vector<8x16xf32>
    %300 = tpu.matmul %293, %294, %cst_39 {dimension_numbers = #tpu.dot_dimension_numbers<[1], [0], [0], [1], [0, 0, 1, 1], [], []>} : vector<8x32xf32>, vector<32x16xf32>, vector<8x16xf32> -> vector<8x16xf32>
    %301 = vector.broadcast %297 : vector<1x16xf32> to vector<8x16xf32>
    %302 = arith.addf %300, %301 : vector<8x16xf32>
    %cst_40 = arith.constant 0.000000e+00 : f32
    %303 = vector.broadcast %cst_40 : f32 to vector<8x16xf32>
    %304 = arith.maximumf %302, %303 : vector<8x16xf32>
    %cst_41 = arith.constant dense<0.000000e+00> : vector<8x8xf32>
    %305 = tpu.matmul %304, %295, %cst_41 {dimension_numbers = #tpu.dot_dimension_numbers<[1], [0], [0], [1], [0, 0, 1, 1], [], []>} : vector<8x16xf32>, vector<16x8xf32>, vector<8x8xf32> -> vector<8x8xf32>
    %306 = vector.broadcast %298 : vector<1x8xf32> to vector<8x8xf32>
    %307 = arith.addf %305, %306 : vector<8x8xf32>
    %cst_42 = arith.constant 0.000000e+00 : f32
    %308 = vector.broadcast %cst_42 : f32 to vector<8x8xf32>
    %309 = arith.maximumf %307, %308 : vector<8x8xf32>
    %cst_43 = arith.constant dense<0.000000e+00> : vector<8x128xf32>
    %310 = tpu.matmul %309, %296, %cst_43 {dimension_numbers = #tpu.dot_dimension_numbers<[1], [0], [0], [1], [0, 0, 1, 1], [], []>} : vector<8x8xf32>, vector<8x128xf32>, vector<8x128xf32> -> vector<8x128xf32>
    %311 = vector.broadcast %299 : vector<1x128xf32> to vector<8x128xf32>
    %312 = arith.addf %310, %311 : vector<8x128xf32>
    %c0_44 = arith.constant 0 : index
    %c0_45 = arith.constant 0 : index
    %313 = vector.load %arg4[%c0_44, %c0_45] : memref<8x128xf32, #tpu.memory_space<vmem>>, vector<8x128xf32>
    tpu.vector_store %arg4[%c0_44, %c0_45], %312 {strides = array<i32>} : memref<8x128xf32, #tpu.memory_space<vmem>>, vector<8x128xf32>,
    return
  }
}

</mosaic_0001>

<llo_original>
// kernel: _lstm_forward.1
$region0: #{_lstm_forward.1}
  #allocation0 [shape = 'u32[]', space=smem, size = 0x4, offset = 0x4, fixed_abs, tag = 'smem constant byte address 0x4 - core index']
  #allocation1 [shape = 'u32[144,128]{1,0:T(1,128)}', space=vmem, size = 0x12000, scoped, tag = 'internal scratch']
  %s0 = inlined_call_operand.vmem [shape: f32[64,32], index: 0, kind: input, shape index: {}]
  %s1 = inlined_call_operand.vmem [shape: f32[64,256], index: 1, kind: input, shape index: {}]
  %s2 = inlined_call_operand.hbm [shape: f32[64,128], index: 2, kind: input, shape index: {}]
  %s3 = inlined_call_operand.vmem [shape: f32[32,32], index: 3, kind: input, shape index: {}]
  %s4 = inlined_call_operand.vmem [shape: f32[8,128], index: 4, kind: output, shape index: {}]
  %s5 = sld [smem:[#allocation0]]
  $region30: #{_lstm_forward.1} parent=0
    _
  %s7 = ssub.s32 1, %s5
  %s8 = scalar_select 0, %s7, %s5
  $region1: #{_lstm_forward.1} parent=0
    #allocation2 [shape = 'u8[32768]{0}', space=vmem, size = 0x8000, scoped, tag = 'input window, operand 2, single buffered']
    #allocation3 [shape = 's32[1]{0}', space=sflag, size = 0x4, scoped, tag = 'scoped memory for _lstm_forward.1']
    %9 = vsyncpa [#allocation3], 0
    // Predicated region
    $region2: #{_lstm_forward.1} parent=1 // pred_check
      _
    $region3: #{_lstm_forward.1} parent=1 // pred_check_branch
      %11 = sbr.rel (0) target = $region5
    $region4: #{_lstm_forward.1} parent=1 // pred_region
      _
    $region5: #{_lstm_forward.1} parent=1 // pred_fallthru
      _
    // Predicated region
    $region6: #{_lstm_forward.1} parent=1 // pred_check
      _
    $region7: #{_lstm_forward.1} parent=1 // pred_check_branch
      %13 = sbr.rel (0) target = $region9
    $region8: #{_lstm_forward.1} parent=1 // pred_region
      _
    $region9: #{_lstm_forward.1} parent=1 // pred_fallthru
      _
    // Predicated region
    $region10: #{_lstm_forward.1} parent=1 // pred_check
      _
    $region11: #{_lstm_forward.1} parent=1 // pred_check_branch
      %15 = sbr.rel (0) target = $region13
    $region12: #{_lstm_forward.1} parent=1 // pred_region
      %s17 = ssub.s32 1024, 1024
      %18 = vsyncadd [#allocation3], %s17
      %s19 = sshll.u32 [#allocation2], 4
      %s20 = int_to_ptr.vmem [resolvable:$true] %s19
      %25 = dma.hbm_to_vmem [thread:$0]  %s2, 1024, %s20, [#allocation3], 128, 128, 8
    $region13: #{_lstm_forward.1} parent=1 // pred_fallthru
      _
    // Predicated region
    $region14: #{_lstm_forward.1} parent=1 // pred_check
      _
    $region15: #{_lstm_forward.1} parent=1 // pred_check_branch
      %27 = sbr.rel (0) target = $region17
    $region16: #{_lstm_forward.1} parent=1 // pred_region
      _
    $region17: #{_lstm_forward.1} parent=1 // pred_fallthru
      _
    // Predicated region
    $region18: #{_lstm_forward.1} parent=1 // pred_check
      _
    $region19: #{_lstm_forward.1} parent=1 // pred_check_branch
      %29 = sbr.rel (0) target = $region21
    $region20: #{_lstm_forward.1} parent=1 // pred_region
      %30 = dma.done [#allocation3], 1024
    $region21: #{_lstm_forward.1} parent=1 // pred_fallthru
      _
    %v31 = vld [vmem:[%s1] sm:$0xff]
    %v32 = vld [vmem:[%s1 + $0x8] sm:$0xff]
    %v33 = vld [vmem:[%s1 + $0x10] sm:$0xff]
    %v34 = vld [vmem:[%s1 + $0x18] sm:$0xff]
    %v35 = vld [vmem:[%s1 + $0x20] sm:$0xff]
    %v36 = vld [vmem:[%s1 + $0x28] sm:$0xff]
    %v37 = vld [vmem:[%s1 + $0x30] sm:$0xff]
    %v38 = vld [vmem:[%s1 + $0x38] sm:$0xff]
    %v39 = vld [vmem:[%s1 + $0x40] sm:$0xff]
    %v40 = vld [vmem:[%s1 + $0x50] sm:$0xff]
    %v41 = vld [vmem:[%s1 + $0x60] sm:$0xff]
    %v42 = vld [vmem:[%s1 + $0x70] sm:$0xff]
    %v43 = vld [vmem:[%s1 + $0x48] sm:$0xff]
    %v44 = vld [vmem:[%s1 + $0x58] sm:$0xff]
    %v45 = vld [vmem:[%s1 + $0x68] sm:$0xff]
    %v46 = vld [vmem:[%s1 + $0x78] sm:$0xff]
    %v47 = vld [vmem:[#allocation2 + $0x38] sm:$0x1]
    %v48 = vld [vmem:[#allocation2 + $0x39] sm:$0x1]
    %v49 = vlaneseq
    %v50 = vshrl.u32 %v49, 7
    %v51 = vsub.s32 0, %v50
    %v52 = vrot.slane %v48, %v51
    %v53 = vld [vmem:[#allocation2 + $0x3d] sm:$0x1]
    %v54 = vlaneseq
    %v55 = vshrl.u32 %v54, 7
    %v56 = vsub.s32 0, %v55
    %v57 = vrot.slane %v53, %v56
    %v58 = vld [vmem:[#allocation2 + $0x3e] sm:$0x1]
    %v59 = vlaneseq
    %v60 = vshrl.u32 %v59, 7
    %v61 = vsub.s32 0, %v60
    %v62 = vrot.slane %v58, %v61
    %v63 = vld [vmem:[%s3] sm:$0xff]
    %v64 = vld [vmem:[%s3 + $0x8] sm:$0xff]
    %v65 = vld [vmem:[%s3 + $0x10] sm:$0xff]
    %v66 = vld [vmem:[%s3 + $0x18] sm:$0xff]
    %v67 = vld [vmem:[%s0] sm:$0xff]
    %v68 = vld [vmem:[%s0 + $0x8] sm:$0xff]
    %v69 = vld [vmem:[%s0 + $0x10] sm:$0xff]
    %v70 = vld [vmem:[%s0 + $0x18] sm:$0xff]
    %v71 = vld [vmem:[%s0 + $0x20] sm:$0xff]
    %v72 = vld [vmem:[%s0 + $0x28] sm:$0xff]
    %v73 = vld [vmem:[%s0 + $0x30] sm:$0xff]
    %v74 = vld [vmem:[%s0 + $0x38] sm:$0xff]
    %v75 = vlaneseq
    %v76 = vshrl.u32 %v75, 7
    %v77 = vsub.s32 0, %v76
    %v78 = vrot.slane %v47, %v77
    %vm79 = vcmask 261120
    %v81 = vsel %vm79, %v67, 0
    %v84 = vsel %vm79, %v68, 0
    %v87 = vsel %vm79, %v69, 0
    %v90 = vsel %vm79, %v70, 0
    %v93 = vsel %vm79, %v71, 0
    %v96 = vsel %vm79, %v72, 0
    %v99 = vsel %vm79, %v73, 0
    %v102 = vsel %vm79, %v74, 0
    %104 = vmatprep.subr.mxu0 0.0
    %105 = vmatpush1.msra.mxu0 0.0
    %106 = vmatprep.subr.mxu0 0.0
    %107 = vmatpush1.msra.mxu0 0.0
    %108 = vmatprep.subr.mxu0 0.0
    %109 = vmatpush1.msra.mxu0 0.0
    %110 = vmatprep.subr.mxu0 0.0
    %111 = vmatpush1.msra.mxu0 0.0
    %112 = vmatprep.subr.mxu0 0.0
    %113 = vmatpush1.msra.mxu0 0.0
    %114 = vmatprep.subr.mxu0 0.0
    %115 = vmatpush1.msra.mxu0 0.0
    %116 = vmatprep.subr.mxu0 0.0
    %117 = vmatpush1.msra.mxu0 0.0
    %118 = vmatprep.subr.mxu0 0.0
    %119 = vmatpush1.msra.mxu0 0.0
    %120 = vmatprep.subr.mxu0 0.0
    %121 = vmatpush1.msra.mxu0 0.0
    %122 = vmatprep.subr.mxu0 0.0
    %123 = vmatpush1.msra.mxu0 0.0
    %124 = vmatprep.subr.mxu0 0.0
    %125 = vmatpush1.msra.mxu0 0.0
    %126 = vmatprep.subr.mxu0 0.0
    %127 = vmatpush1.msra.mxu0 0.0
    %128 = vmatprep.subr.mxu0 0.0
    %129 = vmatpush1.msra.mxu0 %v46
    %130 = vmatprep.subr.mxu0 0.0
    %131 = vmatpush1.msra.mxu0 %v45
    %132 = vmatprep.subr.mxu0 0.0
    %133 = vmatpush1.msra.mxu0 %v44
    %134 = vmatprep.subr.mxu0 0.0
    %135 = vmatpush1.msra.mxu0 %v43
    %136 = vmatprep.subr.mxu0 0.0
    %137 = vmatpush2.msra.mxu0 0.0
    %138 = vmatprep.subr.mxu0 0.0
    %139 = vmatpush2.msra.mxu0 0.0
    %140 = vmatprep.subr.mxu0 0.0
    %141 = vmatpush2.msra.mxu0 0.0
    %142 = vmatprep.subr.mxu0 0.0
    %143 = vmatpush2.msra.mxu0 0.0
    %144 = vmatprep.subr.mxu0 0.0
    %145 = vmatpush2.msra.mxu0 0.0
    %146 = vmatprep.subr.mxu0 0.0
    %147 = vmatpush2.msra.mxu0 0.0
    %148 = vmatprep.subr.mxu0 0.0
    %149 = vmatpush2.msra.mxu0 0.0
    %150 = vmatprep.subr.mxu0 0.0
    %151 = vmatpush2.msra.mxu0 0.0
    %152 = vmatprep.subr.mxu0 0.0
    %153 = vmatpush2.msra.mxu0 0.0
    %154 = vmatprep.subr.mxu0 0.0
    %155 = vmatpush2.msra.mxu0 0.0
    %156 = vmatprep.subr.mxu0 0.0
    %157 = vmatpush2.msra.mxu0 0.0
    %158 = vmatprep.subr.mxu0 0.0
    %159 = vmatpush2.msra.mxu0 0.0
    %160 = vmatprep.subr.mxu0 0.0
    %161 = vmatpush2.msra.mxu0 0.0
    %162 = vmatprep.subr.mxu0 0.0
    %163 = vmatpush2.msra.mxu0 0.0
    %164 = vmatprep.subr.mxu0 0.0
    %165 = vmatpush2.msra.mxu0 0.0
    %166 = vmatprep.subr.mxu0 0.0
    %167 = vmatpush2.msra.mxu0 0.0
    %168 = vmatprep.mubr.f32.mxu0 0.0
    %169 = vmatmul.mubr.f32.gmra.mxu0 %v81
    %v170 = vpop.f32.mrf.mxu0
    %v171 = vadd.f32 %v78, %v170
    %v172 = vpop.f32.mrf.mxu0
    %173 = vmatprep.mubr.f32.mxu0 0.0
    %174 = vmatmul.mubr.f32.gmra.mxu0 %v84
    %v175 = vpop.f32.mrf.mxu0
    %v176 = vadd.f32 %v78, %v175
    %v177 = vpop.f32.mrf.mxu0
    %178 = vmatprep.mubr.f32.mxu0 0.0
    %179 = vmatmul.mubr.f32.gmra.mxu0 %v87
    %v180 = vpop.f32.mrf.mxu0
    %v181 = vadd.f32 %v78, %v180
    %v182 = vpop.f32.mrf.mxu0
    %183 = vmatprep.mubr.f32.mxu0 0.0
    %184 = vmatmul.mubr.f32.gmra.mxu0 %v90
    %v185 = vpop.f32.mrf.mxu0
    %v186 = vadd.f32 %v78, %v185
    %v187 = vpop.f32.mrf.mxu0
    %188 = vmatprep.mubr.f32.mxu0 0.0
    %189 = vmatmul.mubr.f32.gmra.mxu0 %v93
    %v190 = vpop.f32.mrf.mxu0
    %v191 = vadd.f32 %v78, %v190
    %v192 = vpop.f32.mrf.mxu0
    %193 = vmatprep.mubr.f32.mxu0 0.0
    %194 = vmatmul.mubr.f32.gmra.mxu0 %v96
    %v195 = vpop.f32.mrf.mxu0
    %v196 = vadd.f32 %v78, %v195
    %v197 = vpop.f32.mrf.mxu0
    %198 = vmatprep.mubr.f32.mxu0 0.0
    %199 = vmatmul.mubr.f32.gmra.mxu0 %v99
    %v200 = vpop.f32.mrf.mxu0
    %v201 = vadd.f32 %v78, %v200
    %v202 = vpop.f32.mrf.mxu0
    %203 = vmatprep.mubr.f32.mxu0 0.0
    %204 = vmatmul.mubr.f32.gmra.mxu0 %v102
    %v205 = vpop.f32.mrf.mxu0
    %v206 = vadd.f32 %v78, %v205
    %v207 = vpop.f32.mrf.mxu0
    %208 = vdwg.mxu0
    %v210 = vsel %vm79, %v63, 0
    %212 = vmatprep.subr.mxu0 0.0
    %213 = vmatpush1.msra.mxu0 0.0
    %214 = vmatprep.subr.mxu0 0.0
    %215 = vmatpush1.msra.mxu0 0.0
    %216 = vmatprep.subr.mxu0 0.0
    %217 = vmatpush1.msra.mxu0 0.0
    %218 = vmatprep.subr.mxu0 0.0
    %219 = vmatpush1.msra.mxu0 0.0
    %220 = vmatprep.subr.mxu0 0.0
    %221 = vmatpush1.msra.mxu0 0.0
    %222 = vmatprep.subr.mxu0 0.0
    %223 = vmatpush1.msra.mxu0 0.0
    %224 = vmatprep.subr.mxu0 0.0
    %225 = vmatpush1.msra.mxu0 0.0
    %226 = vmatprep.subr.mxu0 0.0
    %227 = vmatpush1.msra.mxu0 0.0
    %228 = vmatprep.subr.mxu0 0.0
    %229 = vmatpush1.msra.mxu0 0.0
    %230 = vmatprep.subr.mxu0 0.0
    %231 = vmatpush1.msra.mxu0 0.0
    %232 = vmatprep.subr.mxu0 0.0
    %233 = vmatpush1.msra.mxu0 0.0
    %234 = vmatprep.subr.mxu0 0.0
    %235 = vmatpush1.msra.mxu0 0.0
    %236 = vmatprep.subr.mxu0 %v38
    %237 = vmatpush1.msra.mxu0 %v37
    %238 = vmatprep.subr.mxu0 %v36
    %239 = vmatpush1.msra.mxu0 %v35
    %240 = vmatprep.subr.mxu0 %v34
    %241 = vmatpush1.msra.mxu0 %v33
    %242 = vmatprep.subr.mxu0 %v32
    %243 = vmatpush1.msra.mxu0 %v31
    %244 = vmatprep.subr.mxu0 0.0
    %245 = vmatpush2.msra.mxu0 0.0
    %246 = vmatprep.subr.mxu0 0.0
    %247 = vmatpush2.msra.mxu0 0.0
    %248 = vmatprep.subr.mxu0 0.0
    %249 = vmatpush2.msra.mxu0 0.0
    %250 = vmatprep.subr.mxu0 0.0
    %251 = vmatpush2.msra.mxu0 0.0
    %252 = vmatprep.subr.mxu0 0.0
    %253 = vmatpush2.msra.mxu0 0.0
    %254 = vmatprep.subr.mxu0 0.0
    %255 = vmatpush2.msra.mxu0 0.0
    %256 = vmatprep.subr.mxu0 0.0
    %257 = vmatpush2.msra.mxu0 0.0
    %258 = vmatprep.subr.mxu0 0.0
    %259 = vmatpush2.msra.mxu0 0.0
    %260 = vmatprep.subr.mxu0 0.0
    %261 = vmatpush2.msra.mxu0 0.0
    %262 = vmatprep.subr.mxu0 0.0
    %263 = vmatpush2.msra.mxu0 0.0
    %264 = vmatprep.subr.mxu0 0.0
    %265 = vmatpush2.msra.mxu0 0.0
    %266 = vmatprep.subr.mxu0 0.0
    %267 = vmatpush2.msra.mxu0 0.0
    %268 = vmatprep.subr.mxu0 0.0
    %269 = vmatpush2.msra.mxu0 0.0
    %270 = vmatprep.subr.mxu0 0.0
    %271 = vmatpush2.msra.mxu0 0.0
    %272 = vmatprep.subr.mxu0 0.0
    %273 = vmatpush2.msra.mxu0 0.0
    %274 = vmatprep.subr.mxu0 0.0
    %275 = vmatpush2.msra.mxu0 0.0
    %276 = vmatprep.mubr.f32.mxu0 0.0
    %277 = vmatmul.mubr.f32.gmra.mxu0 %v210
    %v278 = vpop.f32.mrf.mxu0
    %v279 = vadd.f32 0.0, %v278
    %v280 = vpop.f32.mrf.mxu0
    %281 = vdwg.mxu0
    %v283 = vsel %vm79, %v65, 0
    %285 = vmatprep.subr.mxu0 0.0
    %286 = vmatpush1.msra.mxu0 0.0
    %287 = vmatprep.subr.mxu0 0.0
    %288 = vmatpush1.msra.mxu0 0.0
    %289 = vmatprep.subr.mxu0 0.0
    %290 = vmatpush1.msra.mxu0 0.0
    %291 = vmatprep.subr.mxu0 0.0
    %292 = vmatpush1.msra.mxu0 0.0
    %293 = vmatprep.subr.mxu0 0.0
    %294 = vmatpush1.msra.mxu0 0.0
    %295 = vmatprep.subr.mxu0 0.0
    %296 = vmatpush1.msra.mxu0 0.0
    %297 = vmatprep.subr.mxu0 0.0
    %298 = vmatpush1.msra.mxu0 0.0
    %299 = vmatprep.subr.mxu0 0.0
    %300 = vmatpush1.msra.mxu0 0.0
    %301 = vmatprep.subr.mxu0 0.0
    %302 = vmatpush1.msra.mxu0 0.0
    %303 = vmatprep.subr.mxu0 0.0
    %304 = vmatpush1.msra.mxu0 0.0
    %305 = vmatprep.subr.mxu0 0.0
    %306 = vmatpush1.msra.mxu0 0.0
    %307 = vmatprep.subr.mxu0 0.0
    %308 = vmatpush1.msra.mxu0 0.0
    %309 = vmatprep.subr.mxu0 0.0
    %310 = vmatpush1.msra.mxu0 %v42
    %311 = vmatprep.subr.mxu0 0.0
    %312 = vmatpush1.msra.mxu0 %v41
    %313 = vmatprep.subr.mxu0 0.0
    %314 = vmatpush1.msra.mxu0 %v40
    %315 = vmatprep.subr.mxu0 0.0
    %316 = vmatpush1.msra.mxu0 %v39
    %317 = vmatprep.subr.mxu0 0.0
    %318 = vmatpush2.msra.mxu0 0.0
    %319 = vmatprep.subr.mxu0 0.0
    %320 = vmatpush2.msra.mxu0 0.0
    %321 = vmatprep.subr.mxu0 0.0
    %322 = vmatpush2.msra.mxu0 0.0
    %323 = vmatprep.subr.mxu0 0.0
    %324 = vmatpush2.msra.mxu0 0.0
    %325 = vmatprep.subr.mxu0 0.0
    %326 = vmatpush2.msra.mxu0 0.0
    %327 = vmatprep.subr.mxu0 0.0
    %328 = vmatpush2.msra.mxu0 0.0
    %329 = vmatprep.subr.mxu0 0.0
    %330 = vmatpush2.msra.mxu0 0.0
    %331 = vmatprep.subr.mxu0 0.0
    %332 = vmatpush2.msra.mxu0 0.0
    %333 = vmatprep.subr.mxu0 0.0
    %334 = vmatpush2.msra.mxu0 0.0
    %335 = vmatprep.subr.mxu0 0.0
    %336 = vmatpush2.msra.mxu0 0.0
    %337 = vmatprep.subr.mxu0 0.0
    %338 = vmatpush2.msra.mxu0 0.0
    %339 = vmatprep.subr.mxu0 0.0
    %340 = vmatpush2.msra.mxu0 0.0
    %341 = vmatprep.subr.mxu0 0.0
    %342 = vmatpush2.msra.mxu0 0.0
    %343 = vmatprep.subr.mxu0 0.0
    %344 = vmatpush2.msra.mxu0 0.0
    %345 = vmatprep.subr.mxu0 0.0
    %346 = vmatpush2.msra.mxu0 0.0
    %347 = vmatprep.subr.mxu0 0.0
    %348 = vmatpush2.msra.mxu0 0.0
    %349 = vmatprep.mubr.f32.mxu0 0.0
    %350 = vmatmul.mubr.f32.gmra.mxu0 %v283
    %v351 = vpop.f32.mrf.mxu0
    %v352 = vadd.f32 0.0, %v351
    %v353 = vpop.f32.mrf.mxu0
    %354 = vdwg.mxu0
    %v355 = vadd.f32 %v171, %v279
    %v356 = vmul.f32 %v57, %v355
    %v357 = vtanh.pop %v356
    %v358 = vmul.f32 %v57, %v357
    %v359 = vadd.f32 %v358, %v62
    %361 = vrot.lane.b32.xlu0 %v64, 32
    %v362 = vpop.permute.xlu0 %361
    %v364 = vmul.f32 %v359, %v362
    %366 = vrot.lane.b32.xlu0 %v359, 64
    %v367 = vpop.permute.xlu0 %366
    %v369 = vmul.f32 %v359, %v367
    %371 = vrot.lane.b32.xlu0 %v369, 32
    %v372 = vpop.permute.xlu0 %371
    %v374 = vadd.f32 %v364, %v372
    %v375 = vtanh.pop %v374
    %377 = vrot.lane.b32.xlu0 %v375, 64
    %v378 = vpop.permute.xlu0 %377
    %v380 = vmul.f32 %v359, %v378
    %382 = vrot.lane.b32.xlu0 %v380, 32
    %v383 = vpop.permute.xlu0 %382
    %v384 = vsel %vm79, %v383, 0
    %386 = vmatprep.subr.mxu0 0.0
    %387 = vmatpush1.msra.mxu0 0.0
    %388 = vmatprep.subr.mxu0 0.0
    %389 = vmatpush1.msra.mxu0 0.0
    %390 = vmatprep.subr.mxu0 0.0
    %391 = vmatpush1.msra.mxu0 0.0
    %392 = vmatprep.subr.mxu0 0.0
    %393 = vmatpush1.msra.mxu0 0.0
    %394 = vmatprep.subr.mxu0 0.0
    %395 = vmatpush1.msra.mxu0 0.0
    %396 = vmatprep.subr.mxu0 0.0
    %397 = vmatpush1.msra.mxu0 0.0
    %398 = vmatprep.subr.mxu0 0.0
    %399 = vmatpush1.msra.mxu0 0.0
    %400 = vmatprep.subr.mxu0 0.0
    %401 = vmatpush1.msra.mxu0 0.0
    %402 = vmatprep.subr.mxu0 0.0
    %403 = vmatpush1.msra.mxu0 0.0
    %404 = vmatprep.subr.mxu0 0.0
    %405 = vmatpush1.msra.mxu0 0.0
    %406 = vmatprep.subr.mxu0 0.0
    %407 = vmatpush1.msra.mxu0 0.0
    %408 = vmatprep.subr.mxu0 0.0
    %409 = vmatpush1.msra.mxu0 0.0
    %410 = vmatprep.subr.mxu0 %v38
    %411 = vmatpush1.msra.mxu0 %v37
    %412 = vmatprep.subr.mxu0 %v36
    %413 = vmatpush1.msra.mxu0 %v35
    %414 = vmatprep.subr.mxu0 %v34
    %415 = vmatpush1.msra.mxu0 %v33
    %416 = vmatprep.subr.mxu0 %v32
    %417 = vmatpush1.msra.mxu0 %v31
    %418 = vmatprep.subr.mxu0 0.0
    %419 = vmatpush2.msra.mxu0 0.0
    %420 = vmatprep.subr.mxu0 0.0
    %421 = vmatpush2.msra.mxu0 0.0
    %422 = vmatprep.subr.mxu0 0.0
    %423 = vmatpush2.msra.mxu0 0.0
    %424 = vmatprep.subr.mxu0 0.0
    %425 = vmatpush2.msra.mxu0 0.0
    %426 = vmatprep.subr.mxu0 0.0
    %427 = vmatpush2.msra.mxu0 0.0
    %428 = vmatprep.subr.mxu0 0.0
    %429 = vmatpush2.msra.mxu0 0.0
    %430 = vmatprep.subr.mxu0 0.0
    %431 = vmatpush2.msra.mxu0 0.0
    %432 = vmatprep.subr.mxu0 0.0
    %433 = vmatpush2.msra.mxu0 0.0
    %434 = vmatprep.subr.mxu0 0.0
    %435 = vmatpush2.msra.mxu0 0.0
    %436 = vmatprep.subr.mxu0 0.0
    %437 = vmatpush2.msra.mxu0 0.0
    %438 = vmatprep.subr.mxu0 0.0
    %439 = vmatpush2.msra.mxu0 0.0
    %440 = vmatprep.subr.mxu0 0.0
    %441 = vmatpush2.msra.mxu0 0.0
    %442 = vmatprep.subr.mxu0 0.0
    %443 = vmatpush2.msra.mxu0 0.0
    %444 = vmatprep.subr.mxu0 0.0
    %445 = vmatpush2.msra.mxu0 0.0
    %446 = vmatprep.subr.mxu0 0.0
    %447 = vmatpush2.msra.mxu0 0.0
    %448 = vmatprep.subr.mxu0 0.0
    %449 = vmatpush2.msra.mxu0 0.0
    %450 = vmatprep.mubr.f32.mxu0 0.0
    %451 = vmatmul.mubr.f32.gmra.mxu0 %v384
    %v452 = vpop.f32.mrf.mxu0
    %v453 = vadd.f32 0.0, %v452
    %v454 = vpop.f32.mrf.mxu0
    %v455 = vadd.f32 0.0, %v454
    %456 = vdwg.mxu0
    %v457 = vadd.f32 %v455, %v352
    %v458 = vadd.f32 %v457, %v52
    %v459 = vmul.f32 %v57, %v458
    %v460 = vtanh.pop %v459
    %v461 = vmul.f32 %v57, %v460
    %v462 = vadd.f32 %v461, %v62
    %464 = vrot.lane.b32.xlu0 %v66, 32
    %v465 = vpop.permute.xlu0 %464
    %v467 = vmul.f32 %v462, %v465
    %469 = vrot.lane.b32.xlu0 %v462, 64
    %v470 = vpop.permute.xlu0 %469
    %v472 = vmul.f32 %v462, %v470
    %474 = vrot.lane.b32.xlu0 %v472, 32
    %v475 = vpop.permute.xlu0 %474
    %v477 = vadd.f32 %v467, %v475
    %v478 = vtanh.pop %v477
    %480 = vrot.lane.b32.xlu0 %v478, 64
    %v481 = vpop.permute.xlu0 %480
    %v483 = vmul.f32 %v462, %v481
    %485 = vrot.lane.b32.xlu0 %v483, 32
    %v486 = vpop.permute.xlu0 %485
    %v487 = vsel %vm79, %v486, 0
    %489 = vmatprep.subr.mxu0 0.0
    %490 = vmatpush1.msra.mxu0 0.0
    %491 = vmatprep.subr.mxu0 0.0
    %492 = vmatpush1.msra.mxu0 0.0
    %493 = vmatprep.subr.mxu0 0.0
    %494 = vmatpush1.msra.mxu0 0.0
    %495 = vmatprep.subr.mxu0 0.0
    %496 = vmatpush1.msra.mxu0 0.0
    %497 = vmatprep.subr.mxu0 0.0
    %498 = vmatpush1.msra.mxu0 0.0
    %499 = vmatprep.subr.mxu0 0.0
    %500 = vmatpush1.msra.mxu0 0.0
    %501 = vmatprep.subr.mxu0 0.0
    %502 = vmatpush1.msra.mxu0 0.0
    %503 = vmatprep.subr.mxu0 0.0
    %504 = vmatpush1.msra.mxu0 0.0
    %505 = vmatprep.subr.mxu0 0.0
    %506 = vmatpush1.msra.mxu0 0.0
    %507 = vmatprep.subr.mxu0 0.0
    %508 = vmatpush1.msra.mxu0 0.0
    %509 = vmatprep.subr.mxu0 0.0
    %510 = vmatpush1.msra.mxu0 0.0
    %511 = vmatprep.subr.mxu0 0.0
    %512 = vmatpush1.msra.mxu0 0.0
    %513 = vmatprep.subr.mxu0 0.0
    %514 = vmatpush1.msra.mxu0 %v42
    %515 = vmatprep.subr.mxu0 0.0
    %516 = vmatpush1.msra.mxu0 %v41
    %517 = vmatprep.subr.mxu0 0.0
    %518 = vmatpush1.msra.mxu0 %v40
    %519 = vmatprep.subr.mxu0 0.0
    %520 = vmatpush1.msra.mxu0 %v39
    %521 = vmatprep.subr.mxu0 0.0
    %522 = vmatpush2.msra.mxu0 0.0
    %523 = vmatprep.subr.mxu0 0.0
    %524 = vmatpush2.msra.mxu0 0.0
    %525 = vmatprep.subr.mxu0 0.0
    %526 = vmatpush2.msra.mxu0 0.0
    %527 = vmatprep.subr.mxu0 0.0
    %528 = vmatpush2.msra.mxu0 0.0
    %529 = vmatprep.subr.mxu0 0.0
    %530 = vmatpush2.msra.mxu0 0.0
    %531 = vmatprep.subr.mxu0 0.0
    %532 = vmatpush2.msra.mxu0 0.0
    %533 = vmatprep.subr.mxu0 0.0
    %534 = vmatpush2.msra.mxu0 0.0
    %535 = vmatprep.subr.mxu0 0.0
    %536 = vmatpush2.msra.mxu0 0.0
    %537 = vmatprep.subr.mxu0 0.0
    %538 = vmatpush2.msra.mxu0 0.0
    %539 = vmatprep.subr.mxu0 0.0
    %540 = vmatpush2.msra.mxu0 0.0
    %541 = vmatprep.subr.mxu0 0.0
    %542 = vmatpush2.msra.mxu0 0.0
    %543 = vmatprep.subr.mxu0 0.0
    %544 = vmatpush2.msra.mxu0 0.0
    %545 = vmatprep.subr.mxu0 0.0
    %546 = vmatpush2.msra.mxu0 0.0
    %547 = vmatprep.subr.mxu0 0.0
    %548 = vmatpush2.msra.mxu0 0.0
    %549 = vmatprep.subr.mxu0 0.0
    %550 = vmatpush2.msra.mxu0 0.0
    %551 = vmatprep.subr.mxu0 0.0
    %552 = vmatpush2.msra.mxu0 0.0
    %553 = vmatprep.mubr.f32.mxu0 0.0
    %554 = vmatmul.mubr.f32.gmra.mxu0 %v487
    %v555 = vpop.f32.mrf.mxu0
    %v556 = vadd.f32 0.0, %v555
    %v557 = vpop.f32.mrf.mxu0
    %558 = vdwg.mxu0
    %v559 = vadd.f32 %v176, %v453
    %v560 = vmul.f32 %v57, %v559
    %v561 = vtanh.pop %v560
    %v562 = vmul.f32 %v57, %v561
    %v563 = vadd.f32 %v562, %v62
    %v564 = vmul.f32 %v563, %v374
    %566 = vrot.lane.b32.xlu0 %v563, 64
    %v567 = vpop.permute.xlu0 %566
    %v569 = vmul.f32 %v563, %v567
    %571 = vrot.lane.b32.xlu0 %v569, 32
    %v572 = vpop.permute.xlu0 %571
    %v574 = vadd.f32 %v564, %v572
    %v575 = vtanh.pop %v574
    %577 = vrot.lane.b32.xlu0 %v575, 64
    %v578 = vpop.permute.xlu0 %577
    %v580 = vmul.f32 %v563, %v578
    %582 = vrot.lane.b32.xlu0 %v580, 32
    %v583 = vpop.permute.xlu0 %582
    %v584 = vsel %vm79, %v583, 0
    %586 = vmatprep.subr.mxu0 0.0
    %587 = vmatpush1.msra.mxu0 0.0
    %588 = vmatprep.subr.mxu0 0.0
    %589 = vmatpush1.msra.mxu0 0.0
    %590 = vmatprep.subr.mxu0 0.0
    %591 = vmatpush1.msra.mxu0 0.0
    %592 = vmatprep.subr.mxu0 0.0
    %593 = vmatpush1.msra.mxu0 0.0
    %594 = vmatprep.subr.mxu0 0.0
    %595 = vmatpush1.msra.mxu0 0.0
    %596 = vmatprep.subr.mxu0 0.0
    %597 = vmatpush1.msra.mxu0 0.0
    %598 = vmatprep.subr.mxu0 0.0
    %599 = vmatpush1.msra.mxu0 0.0
    %600 = vmatprep.subr.mxu0 0.0
    %601 = vmatpush1.msra.mxu0 0.0
    %602 = vmatprep.subr.mxu0 0.0
    %603 = vmatpush1.msra.mxu0 0.0
    %604 = vmatprep.subr.mxu0 0.0
    %605 = vmatpush1.msra.mxu0 0.0
    %606 = vmatprep.subr.mxu0 0.0
    %607 = vmatpush1.msra.mxu0 0.0
    %608 = vmatprep.subr.mxu0 0.0
    %609 = vmatpush1.msra.mxu0 0.0
    %610 = vmatprep.subr.mxu0 %v38
    %611 = vmatpush1.msra.mxu0 %v37
    %612 = vmatprep.subr.mxu0 %v36
    %613 = vmatpush1.msra.mxu0 %v35
    %614 = vmatprep.subr.mxu0 %v34
    %615 = vmatpush1.msra.mxu0 %v33
    %616 = vmatprep.subr.mxu0 %v32
    %617 = vmatpush1.msra.mxu0 %v31
    %618 = vmatprep.subr.mxu0 0.0
    %619 = vmatpush2.msra.mxu0 0.0
    %620 = vmatprep.subr.mxu0 0.0
    %621 = vmatpush2.msra.mxu0 0.0
    %622 = vmatprep.subr.mxu0 0.0
    %623 = vmatpush2.msra.mxu0 0.0
    %624 = vmatprep.subr.mxu0 0.0
    %625 = vmatpush2.msra.mxu0 0.0
    %626 = vmatprep.subr.mxu0 0.0
    %627 = vmatpush2.msra.mxu0 0.0
    %628 = vmatprep.subr.mxu0 0.0
    %629 = vmatpush2.msra.mxu0 0.0
    %630 = vmatprep.subr.mxu0 0.0
    %631 = vmatpush2.msra.mxu0 0.0
    %632 = vmatprep.subr.mxu0 0.0
    %633 = vmatpush2.msra.mxu0 0.0
    %634 = vmatprep.subr.mxu0 0.0
    %635 = vmatpush2.msra.mxu0 0.0
    %636 = vmatprep.subr.mxu0 0.0
    %637 = vmatpush2.msra.mxu0 0.0
    %638 = vmatprep.subr.mxu0 0.0
    %639 = vmatpush2.msra.mxu0 0.0
    %640 = vmatprep.subr.mxu0 0.0
    %641 = vmatpush2.msra.mxu0 0.0
    %642 = vmatprep.subr.mxu0 0.0
    %643 = vmatpush2.msra.mxu0 0.0
    %644 = vmatprep.subr.mxu0 0.0
    %645 = vmatpush2.msra.mxu0 0.0
    %646 = vmatprep.subr.mxu0 0.0
    %647 = vmatpush2.msra.mxu0 0.0
    %648 = vmatprep.subr.mxu0 0.0
    %649 = vmatpush2.msra.mxu0 0.0
    %650 = vmatprep.mubr.f32.mxu0 0.0
    %651 = vmatmul.mubr.f32.gmra.mxu0 %v584
    %v652 = vpop.f32.mrf.mxu0
    %v653 = vadd.f32 0.0, %v652
    %v654 = vpop.f32.mrf.mxu0
    %v655 = vadd.f32 0.0, %v654
    %656 = vdwg.mxu0
    %v657 = vadd.f32 %v655, %v556
    %v658 = vadd.f32 %v657, %v52
    %v659 = vmul.f32 %v57, %v658
    %v660 = vtanh.pop %v659
    %v661 = vmul.f32 %v57, %v660
    %v662 = vadd.f32 %v661, %v62
    %v663 = vmul.f32 %v662, %v477
    %665 = vrot.lane.b32.xlu0 %v662, 64
    %v666 = vpop.permute.xlu0 %665
    %v668 = vmul.f32 %v662, %v666
    %670 = vrot.lane.b32.xlu0 %v668, 32
    %v671 = vpop.permute.xlu0 %670
    %v673 = vadd.f32 %v663, %v671
    %v674 = vtanh.pop %v673
    %676 = vrot.lane.b32.xlu0 %v674, 64
    %v677 = vpop.permute.xlu0 %676
    %v679 = vmul.f32 %v662, %v677
    %681 = vrot.lane.b32.xlu0 %v679, 32
    %v682 = vpop.permute.xlu0 %681
    %v683 = vsel %vm79, %v682, 0
    %685 = vmatprep.subr.mxu0 0.0
    %686 = vmatpush1.msra.mxu0 0.0
    %687 = vmatprep.subr.mxu0 0.0
    %688 = vmatpush1.msra.mxu0 0.0
    %689 = vmatprep.subr.mxu0 0.0
    %690 = vmatpush1.msra.mxu0 0.0
    %691 = vmatprep.subr.mxu0 0.0
    %692 = vmatpush1.msra.mxu0 0.0
    %693 = vmatprep.subr.mxu0 0.0
    %694 = vmatpush1.msra.mxu0 0.0
    %695 = vmatprep.subr.mxu0 0.0
    %696 = vmatpush1.msra.mxu0 0.0
    %697 = vmatprep.subr.mxu0 0.0
    %698 = vmatpush1.msra.mxu0 0.0
    %699 = vmatprep.subr.mxu0 0.0
    %700 = vmatpush1.msra.mxu0 0.0
    %701 = vmatprep.subr.mxu0 0.0
    %702 = vmatpush1.msra.mxu0 0.0
    %703 = vmatprep.subr.mxu0 0.0
    %704 = vmatpush1.msra.mxu0 0.0
    %705 = vmatprep.subr.mxu0 0.0
    %706 = vmatpush1.msra.mxu0 0.0
    %707 = vmatprep.subr.mxu0 0.0
    %708 = vmatpush1.msra.mxu0 0.0
    %709 = vmatprep.subr.mxu0 0.0
    %710 = vmatpush1.msra.mxu0 %v42
    %711 = vmatprep.subr.mxu0 0.0
    %712 = vmatpush1.msra.mxu0 %v41
    %713 = vmatprep.subr.mxu0 0.0
    %714 = vmatpush1.msra.mxu0 %v40
    %715 = vmatprep.subr.mxu0 0.0
    %716 = vmatpush1.msra.mxu0 %v39
    %717 = vmatprep.subr.mxu0 0.0
    %718 = vmatpush2.msra.mxu0 0.0
    %719 = vmatprep.subr.mxu0 0.0
    %720 = vmatpush2.msra.mxu0 0.0
    %721 = vmatprep.subr.mxu0 0.0
    %722 = vmatpush2.msra.mxu0 0.0
    %723 = vmatprep.subr.mxu0 0.0
    %724 = vmatpush2.msra.mxu0 0.0
    %725 = vmatprep.subr.mxu0 0.0
    %726 = vmatpush2.msra.mxu0 0.0
    %727 = vmatprep.subr.mxu0 0.0
    %728 = vmatpush2.msra.mxu0 0.0
    %729 = vmatprep.subr.mxu0 0.0
    %730 = vmatpush2.msra.mxu0 0.0
    %731 = vmatprep.subr.mxu0 0.0
    %732 = vmatpush2.msra.mxu0 0.0
    %733 = vmatprep.subr.mxu0 0.0
    %734 = vmatpush2.msra.mxu0 0.0
    %735 = vmatprep.subr.mxu0 0.0
    %736 = vmatpush2.msra.mxu0 0.0
    %737 = vmatprep.subr.mxu0 0.0
    %738 = vmatpush2.msra.mxu0 0.0
    %739 = vmatprep.subr.mxu0 0.0
    %740 = vmatpush2.msra.mxu0 0.0
    %741 = vmatprep.subr.mxu0 0.0
    %742 = vmatpush2.msra.mxu0 0.0
    %743 = vmatprep.subr.mxu0 0.0
    %744 = vmatpush2.msra.mxu0 0.0
    %745 = vmatprep.subr.mxu0 0.0
    %746 = vmatpush2.msra.mxu0 0.0
    %747 = vmatprep.subr.mxu0 0.0
    %748 = vmatpush2.msra.mxu0 0.0
    %749 = vmatprep.mubr.f32.mxu0 0.0
    %750 = vmatmul.mubr.f32.gmra.mxu0 %v683
    %v751 = vpop.f32.mrf.mxu0
    %v752 = vadd.f32 0.0, %v751
    %v753 = vpop.f32.mrf.mxu0
    %754 = vdwg.mxu0
    %v755 = vadd.f32 %v181, %v653
    %v756 = vmul.f32 %v57, %v755
    %v757 = vtanh.pop %v756
    %v758 = vmul.f32 %v57, %v757
    %v759 = vadd.f32 %v758, %v62
    %v760 = vmul.f32 %v759, %v574
    %762 = vrot.lane.b32.xlu0 %v759, 64
    %v763 = vpop.permute.xlu0 %762
    %v765 = vmul.f32 %v759, %v763
    %767 = vrot.lane.b32.xlu0 %v765, 32
    %v768 = vpop.permute.xlu0 %767
    %v770 = vadd.f32 %v760, %v768
    %v771 = vtanh.pop %v770
    %773 = vrot.lane.b32.xlu0 %v771, 64
    %v774 = vpop.permute.xlu0 %773
    %v776 = vmul.f32 %v759, %v774
    %778 = vrot.lane.b32.xlu0 %v776, 32
    %v779 = vpop.permute.xlu0 %778
    %v780 = vsel %vm79, %v779, 0
    %782 = vmatprep.subr.mxu0 0.0
    %783 = vmatpush1.msra.mxu0 0.0
    %784 = vmatprep.subr.mxu0 0.0
    %785 = vmatpush1.msra.mxu0 0.0
    %786 = vmatprep.subr.mxu0 0.0
    %787 = vmatpush1.msra.mxu0 0.0
    %788 = vmatprep.subr.mxu0 0.0
    %789 = vmatpush1.msra.mxu0 0.0
    %790 = vmatprep.subr.mxu0 0.0
    %791 = vmatpush1.msra.mxu0 0.0
    %792 = vmatprep.subr.mxu0 0.0
    %793 = vmatpush1.msra.mxu0 0.0
    %794 = vmatprep.subr.mxu0 0.0
    %795 = vmatpush1.msra.mxu0 0.0
    %796 = vmatprep.subr.mxu0 0.0
    %797 = vmatpush1.msra.mxu0 0.0
    %798 = vmatprep.subr.mxu0 0.0
    %799 = vmatpush1.msra.mxu0 0.0
    %800 = vmatprep.subr.mxu0 0.0
    %801 = vmatpush1.msra.mxu0 0.0
    %802 = vmatprep.subr.mxu0 0.0
    %803 = vmatpush1.msra.mxu0 0.0
    %804 = vmatprep.subr.mxu0 0.0
    %805 = vmatpush1.msra.mxu0 0.0
    %806 = vmatprep.subr.mxu0 %v38
    %807 = vmatpush1.msra.mxu0 %v37
    %808 = vmatprep.subr.mxu0 %v36
    %809 = vmatpush1.msra.mxu0 %v35
    %810 = vmatprep.subr.mxu0 %v34
    %811 = vmatpush1.msra.mxu0 %v33
    %812 = vmatprep.subr.mxu0 %v32
    %813 = vmatpush1.msra.mxu0 %v31
    %814 = vmatprep.subr.mxu0 0.0
    %815 = vmatpush2.msra.mxu0 0.0
    %816 = vmatprep.subr.mxu0 0.0
    %817 = vmatpush2.msra.mxu0 0.0
    %818 = vmatprep.subr.mxu0 0.0
    %819 = vmatpush2.msra.mxu0 0.0
    %820 = vmatprep.subr.mxu0 0.0
    %821 = vmatpush2.msra.mxu0 0.0
    %822 = vmatprep.subr.mxu0 0.0
    %823 = vmatpush2.msra.mxu0 0.0
    %824 = vmatprep.subr.mxu0 0.0
    %825 = vmatpush2.msra.mxu0 0.0
    %826 = vmatprep.subr.mxu0 0.0
    %827 = vmatpush2.msra.mxu0 0.0
    %828 = vmatprep.subr.mxu0 0.0
    %829 = vmatpush2.msra.mxu0 0.0
    %830 = vmatprep.subr.mxu0 0.0
    %831 = vmatpush2.msra.mxu0 0.0
    %832 = vmatprep.subr.mxu0 0.0
    %833 = vmatpush2.msra.mxu0 0.0
    %834 = vmatprep.subr.mxu0 0.0
    %835 = vmatpush2.msra.mxu0 0.0
    %836 = vmatprep.subr.mxu0 0.0
    %837 = vmatpush2.msra.mxu0 0.0
    %838 = vmatprep.subr.mxu0 0.0
    %839 = vmatpush2.msra.mxu0 0.0
    %840 = vmatprep.subr.mxu0 0.0
    %841 = vmatpush2.msra.mxu0 0.0
    %842 = vmatprep.subr.mxu0 0.0
    %843 = vmatpush2.msra.mxu0 0.0
    %844 = vmatprep.subr.mxu0 0.0
    %845 = vmatpush2.msra.mxu0 0.0
    %846 = vmatprep.mubr.f32.mxu0 0.0
    %847 = vmatmul.mubr.f32.gmra.mxu0 %v780
    %v848 = vpop.f32.mrf.mxu0
    %v849 = vadd.f32 0.0, %v848
    %v850 = vpop.f32.mrf.mxu0
    %v851 = vadd.f32 0.0, %v850
    %852 = vdwg.mxu0
    %v853 = vadd.f32 %v851, %v752
    %v854 = vadd.f32 %v853, %v52
    %v855 = vmul.f32 %v57, %v854
    %v856 = vtanh.pop %v855
    %v857 = vmul.f32 %v57, %v856
    %v858 = vadd.f32 %v857, %v62
    %v859 = vmul.f32 %v858, %v673
    %861 = vrot.lane.b32.xlu0 %v858, 64
    %v862 = vpop.permute.xlu0 %861
    %v864 = vmul.f32 %v858, %v862
    %866 = vrot.lane.b32.xlu0 %v864, 32
    %v867 = vpop.permute.xlu0 %866
    %v869 = vadd.f32 %v859, %v867
    %v870 = vtanh.pop %v869
    %872 = vrot.lane.b32.xlu0 %v870, 64
    %v873 = vpop.permute.xlu0 %872
    %v875 = vmul.f32 %v858, %v873
    %877 = vrot.lane.b32.xlu0 %v875, 32
    %v878 = vpop.permute.xlu0 %877
    %v879 = vsel %vm79, %v878, 0
    %881 = vmatprep.subr.mxu0 0.0
    %882 = vmatpush1.msra.mxu0 0.0
    %883 = vmatprep.subr.mxu0 0.0
    %884 = vmatpush1.msra.mxu0 0.0
    %885 = vmatprep.subr.mxu0 0.0
    %886 = vmatpush1.msra.mxu0 0.0
    %887 = vmatprep.subr.mxu0 0.0
    %888 = vmatpush1.msra.mxu0 0.0
    %889 = vmatprep.subr.mxu0 0.0
    %890 = vmatpush1.msra.mxu0 0.0
    %891 = vmatprep.subr.mxu0 0.0
    %892 = vmatpush1.msra.mxu0 0.0
    %893 = vmatprep.subr.mxu0 0.0
    %894 = vmatpush1.msra.mxu0 0.0
    %895 = vmatprep.subr.mxu0 0.0
    %896 = vmatpush1.msra.mxu0 0.0
    %897 = vmatprep.subr.mxu0 0.0
    %898 = vmatpush1.msra.mxu0 0.0
    %899 = vmatprep.subr.mxu0 0.0
    %900 = vmatpush1.msra.mxu0 0.0
    %901 = vmatprep.subr.mxu0 0.0
    %902 = vmatpush1.msra.mxu0 0.0
    %903 = vmatprep.subr.mxu0 0.0
    %904 = vmatpush1.msra.mxu0 0.0
    %905 = vmatprep.subr.mxu0 0.0
    %906 = vmatpush1.msra.mxu0 %v42
    %907 = vmatprep.subr.mxu0 0.0
    %908 = vmatpush1.msra.mxu0 %v41
    %909 = vmatprep.subr.mxu0 0.0
    %910 = vmatpush1.msra.mxu0 %v40
    %911 = vmatprep.subr.mxu0 0.0
    %912 = vmatpush1.msra.mxu0 %v39
    %913 = vmatprep.subr.mxu0 0.0
    %914 = vmatpush2.msra.mxu0 0.0
    %915 = vmatprep.subr.mxu0 0.0
    %916 = vmatpush2.msra.mxu0 0.0
    %917 = vmatprep.subr.mxu0 0.0
    %918 = vmatpush2.msra.mxu0 0.0
    %919 = vmatprep.subr.mxu0 0.0
    %920 = vmatpush2.msra.mxu0 0.0
    %921 = vmatprep.subr.mxu0 0.0
    %922 = vmatpush2.msra.mxu0 0.0
    %923 = vmatprep.subr.mxu0 0.0
    %924 = vmatpush2.msra.mxu0 0.0
    %925 = vmatprep.subr.mxu0 0.0
    %926 = vmatpush2.msra.mxu0 0.0
    %927 = vmatprep.subr.mxu0 0.0
    %928 = vmatpush2.msra.mxu0 0.0
    %929 = vmatprep.subr.mxu0 0.0
    %930 = vmatpush2.msra.mxu0 0.0
    %931 = vmatprep.subr.mxu0 0.0
    %932 = vmatpush2.msra.mxu0 0.0
    %933 = vmatprep.subr.mxu0 0.0
    %934 = vmatpush2.msra.mxu0 0.0
    %935 = vmatprep.subr.mxu0 0.0
    %936 = vmatpush2.msra.mxu0 0.0
    %937 = vmatprep.subr.mxu0 0.0
    %938 = vmatpush2.msra.mxu0 0.0
    %939 = vmatprep.subr.mxu0 0.0
    %940 = vmatpush2.msra.mxu0 0.0
    %941 = vmatprep.subr.mxu0 0.0
    %942 = vmatpush2.msra.mxu0 0.0
    %943 = vmatprep.subr.mxu0 0.0
    %944 = vmatpush2.msra.mxu0 0.0
    %945 = vmatprep.mubr.f32.mxu0 0.0
    %946 = vmatmul.mubr.f32.gmra.mxu0 %v879
    %v947 = vpop.f32.mrf.mxu0
    %v948 = vadd.f32 0.0, %v947
    %v949 = vpop.f32.mrf.mxu0
    %950 = vdwg.mxu0
    %v951 = vadd.f32 %v186, %v849
    %v952 = vmul.f32 %v57, %v951
    %v953 = vtanh.pop %v952
    %v954 = vmul.f32 %v57, %v953
    %v955 = vadd.f32 %v954, %v62
    %v956 = vmul.f32 %v955, %v770
    %958 = vrot.lane.b32.xlu0 %v955, 64
    %v959 = vpop.permute.xlu0 %958
    %v961 = vmul.f32 %v955, %v959
    %963 = vrot.lane.b32.xlu0 %v961, 32
    %v964 = vpop.permute.xlu0 %963
    %v966 = vadd.f32 %v956, %v964
    %v967 = vtanh.pop %v966
    %969 = vrot.lane.b32.xlu0 %v967, 64
    %v970 = vpop.permute.xlu0 %969
    %v972 = vmul.f32 %v955, %v970
    %974 = vrot.lane.b32.xlu0 %v972, 32
    %v975 = vpop.permute.xlu0 %974
    %v976 = vsel %vm79, %v975, 0
    %978 = vmatprep.subr.mxu0 0.0
    %979 = vmatpush1.msra.mxu0 0.0
    %980 = vmatprep.subr.mxu0 0.0
    %981 = vmatpush1.msra.mxu0 0.0
    %982 = vmatprep.subr.mxu0 0.0
    %983 = vmatpush1.msra.mxu0 0.0
    %984 = vmatprep.subr.mxu0 0.0
    %985 = vmatpush1.msra.mxu0 0.0
    %986 = vmatprep.subr.mxu0 0.0
    %987 = vmatpush1.msra.mxu0 0.0
    %988 = vmatprep.subr.mxu0 0.0
    %989 = vmatpush1.msra.mxu0 0.0
    %990 = vmatprep.subr.mxu0 0.0
    %991 = vmatpush1.msra.mxu0 0.0
    %992 = vmatprep.subr.mxu0 0.0
    %993 = vmatpush1.msra.mxu0 0.0
    %994 = vmatprep.subr.mxu0 0.0
    %995 = vmatpush1.msra.mxu0 0.0
    %996 = vmatprep.subr.mxu0 0.0
    %997 = vmatpush1.msra.mxu0 0.0
    %998 = vmatprep.subr.mxu0 0.0
    %999 = vmatpush1.msra.mxu0 0.0
    %1000 = vmatprep.subr.mxu0 0.0
    %1001 = vmatpush1.msra.mxu0 0.0
    %1002 = vmatprep.subr.mxu0 %v38
    %1003 = vmatpush1.msra.mxu0 %v37
    %1004 = vmatprep.subr.mxu0 %v36
    %1005 = vmatpush1.msra.mxu0 %v35
    %1006 = vmatprep.subr.mxu0 %v34
    %1007 = vmatpush1.msra.mxu0 %v33
    %1008 = vmatprep.subr.mxu0 %v32
    %1009 = vmatpush1.msra.mxu0 %v31
    %1010 = vmatprep.subr.mxu0 0.0
    %1011 = vmatpush2.msra.mxu0 0.0
    %1012 = vmatprep.subr.mxu0 0.0
    %1013 = vmatpush2.msra.mxu0 0.0
    %1014 = vmatprep.subr.mxu0 0.0
    %1015 = vmatpush2.msra.mxu0 0.0
    %1016 = vmatprep.subr.mxu0 0.0
    %1017 = vmatpush2.msra.mxu0 0.0
    %1018 = vmatprep.subr.mxu0 0.0
    %1019 = vmatpush2.msra.mxu0 0.0
    %1020 = vmatprep.subr.mxu0 0.0
    %1021 = vmatpush2.msra.mxu0 0.0
    %1022 = vmatprep.subr.mxu0 0.0
    %1023 = vmatpush2.msra.mxu0 0.0
    %1024 = vmatprep.subr.mxu0 0.0
    %1025 = vmatpush2.msra.mxu0 0.0
    %1026 = vmatprep.subr.mxu0 0.0
    %1027 = vmatpush2.msra.mxu0 0.0
    %1028 = vmatprep.subr.mxu0 0.0
    %1029 = vmatpush2.msra.mxu0 0.0
    %1030 = vmatprep.subr.mxu0 0.0
    %1031 = vmatpush2.msra.mxu0 0.0
    %1032 = vmatprep.subr.mxu0 0.0
    %1033 = vmatpush2.msra.mxu0 0.0
    %1034 = vmatprep.subr.mxu0 0.0
    %1035 = vmatpush2.msra.mxu0 0.0
    %1036 = vmatprep.subr.mxu0 0.0
    %1037 = vmatpush2.msra.mxu0 0.0
    %1038 = vmatprep.subr.mxu0 0.0
    %1039 = vmatpush2.msra.mxu0 0.0
    %1040 = vmatprep.subr.mxu0 0.0
    %1041 = vmatpush2.msra.mxu0 0.0
    %1042 = vmatprep.mubr.f32.mxu0 0.0
    %1043 = vmatmul.mubr.f32.gmra.mxu0 %v976
    %v1044 = vpop.f32.mrf.mxu0
    %v1045 = vadd.f32 0.0, %v1044
    %v1046 = vpop.f32.mrf.mxu0
    %v1047 = vadd.f32 0.0, %v1046
    %1048 = vdwg.mxu0
    %v1049 = vadd.f32 %v1047, %v948
    %v1050 = vadd.f32 %v1049, %v52
    %v1051 = vmul.f32 %v57, %v1050
    %v1052 = vtanh.pop %v1051
    %v1053 = vmul.f32 %v57, %v1052
    %v1054 = vadd.f32 %v1053, %v62
    %v1055 = vmul.f32 %v1054, %v869
    %1057 = vrot.lane.b32.xlu0 %v1054, 64
    %v1058 = vpop.permute.xlu0 %1057
    %v1060 = vmul.f32 %v1054, %v1058
    %1062 = vrot.lane.b32.xlu0 %v1060, 32
    %v1063 = vpop.permute.xlu0 %1062
    %v1065 = vadd.f32 %v1055, %v1063
    %v1066 = vtanh.pop %v1065
    %1068 = vrot.lane.b32.xlu0 %v1066, 64
    %v1069 = vpop.permute.xlu0 %1068
    %v1071 = vmul.f32 %v1054, %v1069
    %1073 = vrot.lane.b32.xlu0 %v1071, 32
    %v1074 = vpop.permute.xlu0 %1073
    %v1075 = vsel %vm79, %v1074, 0
    %1077 = vmatprep.subr.mxu0 0.0
    %1078 = vmatpush1.msra.mxu0 0.0
    %1079 = vmatprep.subr.mxu0 0.0
    %1080 = vmatpush1.msra.mxu0 0.0
    %1081 = vmatprep.subr.mxu0 0.0
    %1082 = vmatpush1.msra.mxu0 0.0
    %1083 = vmatprep.subr.mxu0 0.0
    %1084 = vmatpush1.msra.mxu0 0.0
    %1085 = vmatprep.subr.mxu0 0.0
    %1086 = vmatpush1.msra.mxu0 0.0
    %1087 = vmatprep.subr.mxu0 0.0
    %1088 = vmatpush1.msra.mxu0 0.0
    %1089 = vmatprep.subr.mxu0 0.0
    %1090 = vmatpush1.msra.mxu0 0.0
    %1091 = vmatprep.subr.mxu0 0.0
    %1092 = vmatpush1.msra.mxu0 0.0
    %1093 = vmatprep.subr.mxu0 0.0
    %1094 = vmatpush1.msra.mxu0 0.0
    %1095 = vmatprep.subr.mxu0 0.0
    %1096 = vmatpush1.msra.mxu0 0.0
    %1097 = vmatprep.subr.mxu0 0.0
    %1098 = vmatpush1.msra.mxu0 0.0
    %1099 = vmatprep.subr.mxu0 0.0
    %1100 = vmatpush1.msra.mxu0 0.0
    %1101 = vmatprep.subr.mxu0 0.0
    %1102 = vmatpush1.msra.mxu0 %v42
    %1103 = vmatprep.subr.mxu0 0.0
    %1104 = vmatpush1.msra.mxu0 %v41
    %1105 = vmatprep.subr.mxu0 0.0
    %1106 = vmatpush1.msra.mxu0 %v40
    %1107 = vmatprep.subr.mxu0 0.0
    %1108 = vmatpush1.msra.mxu0 %v39
    %1109 = vmatprep.subr.mxu0 0.0
    %1110 = vmatpush2.msra.mxu0 0.0
    %1111 = vmatprep.subr.mxu0 0.0
    %1112 = vmatpush2.msra.mxu0 0.0
    %1113 = vmatprep.subr.mxu0 0.0
    %1114 = vmatpush2.msra.mxu0 0.0
    %1115 = vmatprep.subr.mxu0 0.0
    %1116 = vmatpush2.msra.mxu0 0.0
    %1117 = vmatprep.subr.mxu0 0.0
    %1118 = vmatpush2.msra.mxu0 0.0
    %1119 = vmatprep.subr.mxu0 0.0
    %1120 = vmatpush2.msra.mxu0 0.0
    %1121 = vmatprep.subr.mxu0 0.0
    %1122 = vmatpush2.msra.mxu0 0.0
    %1123 = vmatprep.subr.mxu0 0.0
    %1124 = vmatpush2.msra.mxu0 0.0
    %1125 = vmatprep.subr.mxu0 0.0
    %1126 = vmatpush2.msra.mxu0 0.0
    %1127 = vmatprep.subr.mxu0 0.0
    %1128 = vmatpush2.msra.mxu0 0.0
    %1129 = vmatprep.subr.mxu0 0.0
    %1130 = vmatpush2.msra.mxu0 0.0
    %1131 = vmatprep.subr.mxu0 0.0
    %1132 = vmatpush2.msra.mxu0 0.0
    %1133 = vmatprep.subr.mxu0 0.0
    %1134 = vmatpush2.msra.mxu0 0.0
    %1135 = vmatprep.subr.mxu0 0.0
    %1136 = vmatpush2.msra.mxu0 0.0
    %1137 = vmatprep.subr.mxu0 0.0
    %1138 = vmatpush2.msra.mxu0 0.0
    %1139 = vmatprep.subr.mxu0 0.0
    %1140 = vmatpush2.msra.mxu0 0.0
    %1141 = vmatprep.mubr.f32.mxu0 0.0
    %1142 = vmatmul.mubr.f32.gmra.mxu0 %v1075
    %v1143 = vpop.f32.mrf.mxu0
    %v1144 = vadd.f32 0.0, %v1143
    %v1145 = vpop.f32.mrf.mxu0
    %1146 = vdwg.mxu0
    %v1147 = vadd.f32 %v191, %v1045
    %v1148 = vmul.f32 %v57, %v1147
    %v1149 = vtanh.pop %v1148
    %v1150 = vmul.f32 %v57, %v1149
    %v1151 = vadd.f32 %v1150, %v62
    %v1152 = vmul.f32 %v1151, %v966
    %1154 = vrot.lane.b32.xlu0 %v1151, 64
    %v1155 = vpop.permute.xlu0 %1154
    %v1157 = vmul.f32 %v1151, %v1155
    %1159 = vrot.lane.b32.xlu0 %v1157, 32
    %v1160 = vpop.permute.xlu0 %1159
    %v1162 = vadd.f32 %v1152, %v1160
    %v1163 = vtanh.pop %v1162
    %1165 = vrot.lane.b32.xlu0 %v1163, 64
    %v1166 = vpop.permute.xlu0 %1165
    %v1168 = vmul.f32 %v1151, %v1166
    %1170 = vrot.lane.b32.xlu0 %v1168, 32
    %v1171 = vpop.permute.xlu0 %1170
    %v1172 = vsel %vm79, %v1171, 0
    %1174 = vmatprep.subr.mxu0 0.0
    %1175 = vmatpush1.msra.mxu0 0.0
    %1176 = vmatprep.subr.mxu0 0.0
    %1177 = vmatpush1.msra.mxu0 0.0
    %1178 = vmatprep.subr.mxu0 0.0
    %1179 = vmatpush1.msra.mxu0 0.0
    %1180 = vmatprep.subr.mxu0 0.0
    %1181 = vmatpush1.msra.mxu0 0.0
    %1182 = vmatprep.subr.mxu0 0.0
    %1183 = vmatpush1.msra.mxu0 0.0
    %1184 = vmatprep.subr.mxu0 0.0
    %1185 = vmatpush1.msra.mxu0 0.0
    %1186 = vmatprep.subr.mxu0 0.0
    %1187 = vmatpush1.msra.mxu0 0.0
    %1188 = vmatprep.subr.mxu0 0.0
    %1189 = vmatpush1.msra.mxu0 0.0
    %1190 = vmatprep.subr.mxu0 0.0
    %1191 = vmatpush1.msra.mxu0 0.0
    %1192 = vmatprep.subr.mxu0 0.0
    %1193 = vmatpush1.msra.mxu0 0.0
    %1194 = vmatprep.subr.mxu0 0.0
    %1195 = vmatpush1.msra.mxu0 0.0
    %1196 = vmatprep.subr.mxu0 0.0
    %1197 = vmatpush1.msra.mxu0 0.0
    %1198 = vmatprep.subr.mxu0 %v38
    %1199 = vmatpush1.msra.mxu0 %v37
    %1200 = vmatprep.subr.mxu0 %v36
    %1201 = vmatpush1.msra.mxu0 %v35
    %1202 = vmatprep.subr.mxu0 %v34
    %1203 = vmatpush1.msra.mxu0 %v33
    %1204 = vmatprep.subr.mxu0 %v32
    %1205 = vmatpush1.msra.mxu0 %v31
    %1206 = vmatprep.subr.mxu0 0.0
    %1207 = vmatpush2.msra.mxu0 0.0
    %1208 = vmatprep.subr.mxu0 0.0
    %1209 = vmatpush2.msra.mxu0 0.0
    %1210 = vmatprep.subr.mxu0 0.0
    %1211 = vmatpush2.msra.mxu0 0.0
    %1212 = vmatprep.subr.mxu0 0.0
    %1213 = vmatpush2.msra.mxu0 0.0
    %1214 = vmatprep.subr.mxu0 0.0
    %1215 = vmatpush2.msra.mxu0 0.0
    %1216 = vmatprep.subr.mxu0 0.0
    %1217 = vmatpush2.msra.mxu0 0.0
    %1218 = vmatprep.subr.mxu0 0.0
    %1219 = vmatpush2.msra.mxu0 0.0
    %1220 = vmatprep.subr.mxu0 0.0
    %1221 = vmatpush2.msra.mxu0 0.0
    %1222 = vmatprep.subr.mxu0 0.0
    %1223 = vmatpush2.msra.mxu0 0.0
    %1224 = vmatprep.subr.mxu0 0.0
    %1225 = vmatpush2.msra.mxu0 0.0
    %1226 = vmatprep.subr.mxu0 0.0
    %1227 = vmatpush2.msra.mxu0 0.0
    %1228 = vmatprep.subr.mxu0 0.0
    %1229 = vmatpush2.msra.mxu0 0.0
    %1230 = vmatprep.subr.mxu0 0.0
    %1231 = vmatpush2.msra.mxu0 0.0
    %1232 = vmatprep.subr.mxu0 0.0
    %1233 = vmatpush2.msra.mxu0 0.0
    %1234 = vmatprep.subr.mxu0 0.0
    %1235 = vmatpush2.msra.mxu0 0.0
    %1236 = vmatprep.subr.mxu0 0.0
    %1237 = vmatpush2.msra.mxu0 0.0
    %1238 = vmatprep.mubr.f32.mxu0 0.0
    %1239 = vmatmul.mubr.f32.gmra.mxu0 %v1172
    %v1240 = vpop.f32.mrf.mxu0
    %v1241 = vadd.f32 0.0, %v1240
    %v1242 = vpop.f32.mrf.mxu0
    %v1243 = vadd.f32 0.0, %v1242
    %1244 = vdwg.mxu0
    %v1245 = vadd.f32 %v1243, %v1144
    %v1246 = vadd.f32 %v1245, %v52
    %v1247 = vmul.f32 %v57, %v1246
    %v1248 = vtanh.pop %v1247
    %v1249 = vmul.f32 %v57, %v1248
    %v1250 = vadd.f32 %v1249, %v62
    %v1251 = vmul.f32 %v1250, %v1065
    %1253 = vrot.lane.b32.xlu0 %v1250, 64
    %v1254 = vpop.permute.xlu0 %1253
    %v1256 = vmul.f32 %v1250, %v1254
    %1258 = vrot.lane.b32.xlu0 %v1256, 32
    %v1259 = vpop.permute.xlu0 %1258
    %v1261 = vadd.f32 %v1251, %v1259
    %v1262 = vtanh.pop %v1261
    %1264 = vrot.lane.b32.xlu0 %v1262, 64
    %v1265 = vpop.permute.xlu0 %1264
    %v1267 = vmul.f32 %v1250, %v1265
    %1269 = vrot.lane.b32.xlu0 %v1267, 32
    %v1270 = vpop.permute.xlu0 %1269
    %v1271 = vsel %vm79, %v1270, 0
    %1273 = vmatprep.subr.mxu0 0.0
    %1274 = vmatpush1.msra.mxu0 0.0
    %1275 = vmatprep.subr.mxu0 0.0
    %1276 = vmatpush1.msra.mxu0 0.0
    %1277 = vmatprep.subr.mxu0 0.0
    %1278 = vmatpush1.msra.mxu0 0.0
    %1279 = vmatprep.subr.mxu0 0.0
    %1280 = vmatpush1.msra.mxu0 0.0
    %1281 = vmatprep.subr.mxu0 0.0
    %1282 = vmatpush1.msra.mxu0 0.0
    %1283 = vmatprep.subr.mxu0 0.0
    %1284 = vmatpush1.msra.mxu0 0.0
    %1285 = vmatprep.subr.mxu0 0.0
    %1286 = vmatpush1.msra.mxu0 0.0
    %1287 = vmatprep.subr.mxu0 0.0
    %1288 = vmatpush1.msra.mxu0 0.0
    %1289 = vmatprep.subr.mxu0 0.0
    %1290 = vmatpush1.msra.mxu0 0.0
    %1291 = vmatprep.subr.mxu0 0.0
    %1292 = vmatpush1.msra.mxu0 0.0
    %1293 = vmatprep.subr.mxu0 0.0
    %1294 = vmatpush1.msra.mxu0 0.0
    %1295 = vmatprep.subr.mxu0 0.0
    %1296 = vmatpush1.msra.mxu0 0.0
    %1297 = vmatprep.subr.mxu0 0.0
    %1298 = vmatpush1.msra.mxu0 %v42
    %1299 = vmatprep.subr.mxu0 0.0
    %1300 = vmatpush1.msra.mxu0 %v41
    %1301 = vmatprep.subr.mxu0 0.0
    %1302 = vmatpush1.msra.mxu0 %v40
    %1303 = vmatprep.subr.mxu0 0.0
    %1304 = vmatpush1.msra.mxu0 %v39
    %1305 = vmatprep.subr.mxu0 0.0
    %1306 = vmatpush2.msra.mxu0 0.0
    %1307 = vmatprep.subr.mxu0 0.0
    %1308 = vmatpush2.msra.mxu0 0.0
    %1309 = vmatprep.subr.mxu0 0.0
    %1310 = vmatpush2.msra.mxu0 0.0
    %1311 = vmatprep.subr.mxu0 0.0
    %1312 = vmatpush2.msra.mxu0 0.0
    %1313 = vmatprep.subr.mxu0 0.0
    %1314 = vmatpush2.msra.mxu0 0.0
    %1315 = vmatprep.subr.mxu0 0.0
    %1316 = vmatpush2.msra.mxu0 0.0
    %1317 = vmatprep.subr.mxu0 0.0
    %1318 = vmatpush2.msra.mxu0 0.0
    %1319 = vmatprep.subr.mxu0 0.0
    %1320 = vmatpush2.msra.mxu0 0.0
    %1321 = vmatprep.subr.mxu0 0.0
    %1322 = vmatpush2.msra.mxu0 0.0
    %1323 = vmatprep.subr.mxu0 0.0
    %1324 = vmatpush2.msra.mxu0 0.0
    %1325 = vmatprep.subr.mxu0 0.0
    %1326 = vmatpush2.msra.mxu0 0.0
    %1327 = vmatprep.subr.mxu0 0.0
    %1328 = vmatpush2.msra.mxu0 0.0
    %1329 = vmatprep.subr.mxu0 0.0
    %1330 = vmatpush2.msra.mxu0 0.0
    %1331 = vmatprep.subr.mxu0 0.0
    %1332 = vmatpush2.msra.mxu0 0.0
    %1333 = vmatprep.subr.mxu0 0.0
    %1334 = vmatpush2.msra.mxu0 0.0
    %1335 = vmatprep.subr.mxu0 0.0
    %1336 = vmatpush2.msra.mxu0 0.0
    %1337 = vmatprep.mubr.f32.mxu0 0.0
    %1338 = vmatmul.mubr.f32.gmra.mxu0 %v1271
    %v1339 = vpop.f32.mrf.mxu0
    %v1340 = vadd.f32 0.0, %v1339
    %v1341 = vpop.f32.mrf.mxu0
    %1342 = vdwg.mxu0
    %v1343 = vadd.f32 %v196, %v1241
    %v1344 = vmul.f32 %v57, %v1343
    %v1345 = vtanh.pop %v1344
    %v1346 = vmul.f32 %v57, %v1345
    %v1347 = vadd.f32 %v1346, %v62
    %v1348 = vmul.f32 %v1347, %v1162
    %1350 = vrot.lane.b32.xlu0 %v1347, 64
    %v1351 = vpop.permute.xlu0 %1350
    %v1353 = vmul.f32 %v1347, %v1351
    %1355 = vrot.lane.b32.xlu0 %v1353, 32
    %v1356 = vpop.permute.xlu0 %1355
    %v1358 = vadd.f32 %v1348, %v1356
    %v1359 = vtanh.pop %v1358
    %1361 = vrot.lane.b32.xlu0 %v1359, 64
    %v1362 = vpop.permute.xlu0 %1361
    %v1364 = vmul.f32 %v1347, %v1362
    %1366 = vrot.lane.b32.xlu0 %v1364, 32
    %v1367 = vpop.permute.xlu0 %1366
    %v1368 = vsel %vm79, %v1367, 0
    %1370 = vmatprep.subr.mxu0 0.0
    %1371 = vmatpush1.msra.mxu0 0.0
    %1372 = vmatprep.subr.mxu0 0.0
    %1373 = vmatpush1.msra.mxu0 0.0
    %1374 = vmatprep.subr.mxu0 0.0
    %1375 = vmatpush1.msra.mxu0 0.0
    %1376 = vmatprep.subr.mxu0 0.0
    %1377 = vmatpush1.msra.mxu0 0.0
    %1378 = vmatprep.subr.mxu0 0.0
    %1379 = vmatpush1.msra.mxu0 0.0
    %1380 = vmatprep.subr.mxu0 0.0
    %1381 = vmatpush1.msra.mxu0 0.0
    %1382 = vmatprep.subr.mxu0 0.0
    %1383 = vmatpush1.msra.mxu0 0.0
    %1384 = vmatprep.subr.mxu0 0.0
    %1385 = vmatpush1.msra.mxu0 0.0
    %1386 = vmatprep.subr.mxu0 0.0
    %1387 = vmatpush1.msra.mxu0 0.0
    %1388 = vmatprep.subr.mxu0 0.0
    %1389 = vmatpush1.msra.mxu0 0.0
    %1390 = vmatprep.subr.mxu0 0.0
    %1391 = vmatpush1.msra.mxu0 0.0
    %1392 = vmatprep.subr.mxu0 0.0
    %1393 = vmatpush1.msra.mxu0 0.0
    %1394 = vmatprep.subr.mxu0 %v38
    %1395 = vmatpush1.msra.mxu0 %v37
    %1396 = vmatprep.subr.mxu0 %v36
    %1397 = vmatpush1.msra.mxu0 %v35
    %1398 = vmatprep.subr.mxu0 %v34
    %1399 = vmatpush1.msra.mxu0 %v33
    %1400 = vmatprep.subr.mxu0 %v32
    %1401 = vmatpush1.msra.mxu0 %v31
    %1402 = vmatprep.subr.mxu0 0.0
    %1403 = vmatpush2.msra.mxu0 0.0
    %1404 = vmatprep.subr.mxu0 0.0
    %1405 = vmatpush2.msra.mxu0 0.0
    %1406 = vmatprep.subr.mxu0 0.0
    %1407 = vmatpush2.msra.mxu0 0.0
    %1408 = vmatprep.subr.mxu0 0.0
    %1409 = vmatpush2.msra.mxu0 0.0
    %1410 = vmatprep.subr.mxu0 0.0
    %1411 = vmatpush2.msra.mxu0 0.0
    %1412 = vmatprep.subr.mxu0 0.0
    %1413 = vmatpush2.msra.mxu0 0.0
    %1414 = vmatprep.subr.mxu0 0.0
    %1415 = vmatpush2.msra.mxu0 0.0
    %1416 = vmatprep.subr.mxu0 0.0
    %1417 = vmatpush2.msra.mxu0 0.0
    %1418 = vmatprep.subr.mxu0 0.0
    %1419 = vmatpush2.msra.mxu0 0.0
    %1420 = vmatprep.subr.mxu0 0.0
    %1421 = vmatpush2.msra.mxu0 0.0
    %1422 = vmatprep.subr.mxu0 0.0
    %1423 = vmatpush2.msra.mxu0 0.0
    %1424 = vmatprep.subr.mxu0 0.0
    %1425 = vmatpush2.msra.mxu0 0.0
    %1426 = vmatprep.subr.mxu0 0.0
    %1427 = vmatpush2.msra.mxu0 0.0
    %1428 = vmatprep.subr.mxu0 0.0
    %1429 = vmatpush2.msra.mxu0 0.0
    %1430 = vmatprep.subr.mxu0 0.0
    %1431 = vmatpush2.msra.mxu0 0.0
    %1432 = vmatprep.subr.mxu0 0.0
    %1433 = vmatpush2.msra.mxu0 0.0
    %1434 = vmatprep.mubr.f32.mxu0 0.0
    %1435 = vmatmul.mubr.f32.gmra.mxu0 %v1368
    %v1436 = vpop.f32.mrf.mxu0
    %v1437 = vadd.f32 0.0, %v1436
    %v1438 = vpop.f32.mrf.mxu0
    %v1439 = vadd.f32 0.0, %v1438
    %1440 = vdwg.mxu0
    %v1441 = vadd.f32 %v1439, %v1340
    %v1442 = vadd.f32 %v1441, %v52
    %v1443 = vmul.f32 %v57, %v1442
    %v1444 = vtanh.pop %v1443
    %v1445 = vmul.f32 %v57, %v1444
    %v1446 = vadd.f32 %v1445, %v62
    %v1447 = vmul.f32 %v1446, %v1261
    %1449 = vrot.lane.b32.xlu0 %v1446, 64
    %v1450 = vpop.permute.xlu0 %1449
    %v1452 = vmul.f32 %v1446, %v1450
    %1454 = vrot.lane.b32.xlu0 %v1452, 32
    %v1455 = vpop.permute.xlu0 %1454
    %v1457 = vadd.f32 %v1447, %v1455
    %v1458 = vtanh.pop %v1457
    %1460 = vrot.lane.b32.xlu0 %v1458, 64
    %v1461 = vpop.permute.xlu0 %1460
    %v1463 = vmul.f32 %v1446, %v1461
    %1465 = vrot.lane.b32.xlu0 %v1463, 32
    %v1466 = vpop.permute.xlu0 %1465
    %v1467 = vsel %vm79, %v1466, 0
    %1469 = vmatprep.subr.mxu0 0.0
    %1470 = vmatpush1.msra.mxu0 0.0
    %1471 = vmatprep.subr.mxu0 0.0
    %1472 = vmatpush1.msra.mxu0 0.0
    %1473 = vmatprep.subr.mxu0 0.0
    %1474 = vmatpush1.msra.mxu0 0.0
    %1475 = vmatprep.subr.mxu0 0.0
    %1476 = vmatpush1.msra.mxu0 0.0
    %1477 = vmatprep.subr.mxu0 0.0
    %1478 = vmatpush1.msra.mxu0 0.0
    %1479 = vmatprep.subr.mxu0 0.0
    %1480 = vmatpush1.msra.mxu0 0.0
    %1481 = vmatprep.subr.mxu0 0.0
    %1482 = vmatpush1.msra.mxu0 0.0
    %1483 = vmatprep.subr.mxu0 0.0
    %1484 = vmatpush1.msra.mxu0 0.0
    %1485 = vmatprep.subr.mxu0 0.0
    %1486 = vmatpush1.msra.mxu0 0.0
    %1487 = vmatprep.subr.mxu0 0.0
    %1488 = vmatpush1.msra.mxu0 0.0
    %1489 = vmatprep.subr.mxu0 0.0
    %1490 = vmatpush1.msra.mxu0 0.0
    %1491 = vmatprep.subr.mxu0 0.0
    %1492 = vmatpush1.msra.mxu0 0.0
    %1493 = vmatprep.subr.mxu0 0.0
    %1494 = vmatpush1.msra.mxu0 %v42
    %1495 = vmatprep.subr.mxu0 0.0
    %1496 = vmatpush1.msra.mxu0 %v41
    %1497 = vmatprep.subr.mxu0 0.0
    %1498 = vmatpush1.msra.mxu0 %v40
    %1499 = vmatprep.subr.mxu0 0.0
    %1500 = vmatpush1.msra.mxu0 %v39
    %1501 = vmatprep.subr.mxu0 0.0
    %1502 = vmatpush2.msra.mxu0 0.0
    %1503 = vmatprep.subr.mxu0 0.0
    %1504 = vmatpush2.msra.mxu0 0.0
    %1505 = vmatprep.subr.mxu0 0.0
    %1506 = vmatpush2.msra.mxu0 0.0
    %1507 = vmatprep.subr.mxu0 0.0
    %1508 = vmatpush2.msra.mxu0 0.0
    %1509 = vmatprep.subr.mxu0 0.0
    %1510 = vmatpush2.msra.mxu0 0.0
    %1511 = vmatprep.subr.mxu0 0.0
    %1512 = vmatpush2.msra.mxu0 0.0
    %1513 = vmatprep.subr.mxu0 0.0
    %1514 = vmatpush2.msra.mxu0 0.0
    %1515 = vmatprep.subr.mxu0 0.0
    %1516 = vmatpush2.msra.mxu0 0.0
    %1517 = vmatprep.subr.mxu0 0.0
    %1518 = vmatpush2.msra.mxu0 0.0
    %1519 = vmatprep.subr.mxu0 0.0
    %1520 = vmatpush2.msra.mxu0 0.0
    %1521 = vmatprep.subr.mxu0 0.0
    %1522 = vmatpush2.msra.mxu0 0.0
    %1523 = vmatprep.subr.mxu0 0.0
    %1524 = vmatpush2.msra.mxu0 0.0
    %1525 = vmatprep.subr.mxu0 0.0
    %1526 = vmatpush2.msra.mxu0 0.0
    %1527 = vmatprep.subr.mxu0 0.0
    %1528 = vmatpush2.msra.mxu0 0.0
    %1529 = vmatprep.subr.mxu0 0.0
    %1530 = vmatpush2.msra.mxu0 0.0
    %1531 = vmatprep.subr.mxu0 0.0
    %1532 = vmatpush2.msra.mxu0 0.0
    %1533 = vmatprep.mubr.f32.mxu0 0.0
    %1534 = vmatmul.mubr.f32.gmra.mxu0 %v1467
    %v1535 = vpop.f32.mrf.mxu0
    %v1536 = vadd.f32 0.0, %v1535
    %v1537 = vpop.f32.mrf.mxu0
    %1538 = vdwg.mxu0
    %v1539 = vadd.f32 %v201, %v1437
    %v1540 = vmul.f32 %v57, %v1539
    %v1541 = vtanh.pop %v1540
    %v1542 = vmul.f32 %v57, %v1541
    %v1543 = vadd.f32 %v1542, %v62
    %v1544 = vmul.f32 %v1543, %v1358
    %1546 = vrot.lane.b32.xlu0 %v1543, 64
    %v1547 = vpop.permute.xlu0 %1546
    %v1549 = vmul.f32 %v1543, %v1547
    %1551 = vrot.lane.b32.xlu0 %v1549, 32
    %v1552 = vpop.permute.xlu0 %1551
    %v1554 = vadd.f32 %v1544, %v1552
    %v1555 = vtanh.pop %v1554
    %1557 = vrot.lane.b32.xlu0 %v1555, 64
    %v1558 = vpop.permute.xlu0 %1557
    %v1560 = vmul.f32 %v1543, %v1558
    %1562 = vrot.lane.b32.xlu0 %v1560, 32
    %v1563 = vpop.permute.xlu0 %1562
    %v1564 = vsel %vm79, %v1563, 0
    %1566 = vmatprep.subr.mxu0 0.0
    %1567 = vmatpush1.msra.mxu0 0.0
    %1568 = vmatprep.subr.mxu0 0.0
    %1569 = vmatpush1.msra.mxu0 0.0
    %1570 = vmatprep.subr.mxu0 0.0
    %1571 = vmatpush1.msra.mxu0 0.0
    %1572 = vmatprep.subr.mxu0 0.0
    %1573 = vmatpush1.msra.mxu0 0.0
    %1574 = vmatprep.subr.mxu0 0.0
    %1575 = vmatpush1.msra.mxu0 0.0
    %1576 = vmatprep.subr.mxu0 0.0
    %1577 = vmatpush1.msra.mxu0 0.0
    %1578 = vmatprep.subr.mxu0 0.0
    %1579 = vmatpush1.msra.mxu0 0.0
    %1580 = vmatprep.subr.mxu0 0.0
    %1581 = vmatpush1.msra.mxu0 0.0
    %1582 = vmatprep.subr.mxu0 0.0
    %1583 = vmatpush1.msra.mxu0 0.0
    %1584 = vmatprep.subr.mxu0 0.0
    %1585 = vmatpush1.msra.mxu0 0.0
    %1586 = vmatprep.subr.mxu0 0.0
    %1587 = vmatpush1.msra.mxu0 0.0
    %1588 = vmatprep.subr.mxu0 0.0
    %1589 = vmatpush1.msra.mxu0 0.0
    %1590 = vmatprep.subr.mxu0 %v38
    %1591 = vmatpush1.msra.mxu0 %v37
    %1592 = vmatprep.subr.mxu0 %v36
    %1593 = vmatpush1.msra.mxu0 %v35
    %1594 = vmatprep.subr.mxu0 %v34
    %1595 = vmatpush1.msra.mxu0 %v33
    %1596 = vmatprep.subr.mxu0 %v32
    %1597 = vmatpush1.msra.mxu0 %v31
    %1598 = vmatprep.subr.mxu0 0.0
    %1599 = vmatpush2.msra.mxu0 0.0
    %1600 = vmatprep.subr.mxu0 0.0
    %1601 = vmatpush2.msra.mxu0 0.0
    %1602 = vmatprep.subr.mxu0 0.0
    %1603 = vmatpush2.msra.mxu0 0.0
    %1604 = vmatprep.subr.mxu0 0.0
    %1605 = vmatpush2.msra.mxu0 0.0
    %1606 = vmatprep.subr.mxu0 0.0
    %1607 = vmatpush2.msra.mxu0 0.0
    %1608 = vmatprep.subr.mxu0 0.0
    %1609 = vmatpush2.msra.mxu0 0.0
    %1610 = vmatprep.subr.mxu0 0.0
    %1611 = vmatpush2.msra.mxu0 0.0
    %1612 = vmatprep.subr.mxu0 0.0
    %1613 = vmatpush2.msra.mxu0 0.0
    %1614 = vmatprep.subr.mxu0 0.0
    %1615 = vmatpush2.msra.mxu0 0.0
    %1616 = vmatprep.subr.mxu0 0.0
    %1617 = vmatpush2.msra.mxu0 0.0
    %1618 = vmatprep.subr.mxu0 0.0
    %1619 = vmatpush2.msra.mxu0 0.0
    %1620 = vmatprep.subr.mxu0 0.0
    %1621 = vmatpush2.msra.mxu0 0.0
    %1622 = vmatprep.subr.mxu0 0.0
    %1623 = vmatpush2.msra.mxu0 0.0
    %1624 = vmatprep.subr.mxu0 0.0
    %1625 = vmatpush2.msra.mxu0 0.0
    %1626 = vmatprep.subr.mxu0 0.0
    %1627 = vmatpush2.msra.mxu0 0.0
    %1628 = vmatprep.subr.mxu0 0.0
    %1629 = vmatpush2.msra.mxu0 0.0
    %1630 = vmatprep.mubr.f32.mxu0 0.0
    %1631 = vmatmul.mubr.f32.gmra.mxu0 %v1564
    %v1632 = vpop.f32.mrf.mxu0
    %v1633 = vadd.f32 0.0, %v1632
    %v1634 = vpop.f32.mrf.mxu0
    %v1635 = vadd.f32 0.0, %v1634
    %1636 = vdwg.mxu0
    %v1637 = vadd.f32 %v1635, %v1536
    %v1638 = vadd.f32 %v1637, %v52
    %v1639 = vmul.f32 %v57, %v1638
    %v1640 = vtanh.pop %v1639
    %v1641 = vmul.f32 %v57, %v1640
    %v1642 = vadd.f32 %v1641, %v62
    %v1643 = vmul.f32 %v1642, %v1457
    %1645 = vrot.lane.b32.xlu0 %v1642, 64
    %v1646 = vpop.permute.xlu0 %1645
    %v1648 = vmul.f32 %v1642, %v1646
    %1650 = vrot.lane.b32.xlu0 %v1648, 32
    %v1651 = vpop.permute.xlu0 %1650
    %v1653 = vadd.f32 %v1643, %v1651
    %v1654 = vtanh.pop %v1653
    %1656 = vrot.lane.b32.xlu0 %v1654, 64
    %v1657 = vpop.permute.xlu0 %1656
    %v1659 = vmul.f32 %v1642, %v1657
    %1661 = vrot.lane.b32.xlu0 %v1659, 32
    %v1662 = vpop.permute.xlu0 %1661
    %v1663 = vsel %vm79, %v1662, 0
    %1665 = vmatprep.subr.mxu0 0.0
    %1666 = vmatpush1.msra.mxu0 0.0
    %1667 = vmatprep.subr.mxu0 0.0
    %1668 = vmatpush1.msra.mxu0 0.0
    %1669 = vmatprep.subr.mxu0 0.0
    %1670 = vmatpush1.msra.mxu0 0.0
    %1671 = vmatprep.subr.mxu0 0.0
    %1672 = vmatpush1.msra.mxu0 0.0
    %1673 = vmatprep.subr.mxu0 0.0
    %1674 = vmatpush1.msra.mxu0 0.0
    %1675 = vmatprep.subr.mxu0 0.0
    %1676 = vmatpush1.msra.mxu0 0.0
    %1677 = vmatprep.subr.mxu0 0.0
    %1678 = vmatpush1.msra.mxu0 0.0
    %1679 = vmatprep.subr.mxu0 0.0
    %1680 = vmatpush1.msra.mxu0 0.0
    %1681 = vmatprep.subr.mxu0 0.0
    %1682 = vmatpush1.msra.mxu0 0.0
    %1683 = vmatprep.subr.mxu0 0.0
    %1684 = vmatpush1.msra.mxu0 0.0
    %1685 = vmatprep.subr.mxu0 0.0
    %1686 = vmatpush1.msra.mxu0 0.0
    %1687 = vmatprep.subr.mxu0 0.0
    %1688 = vmatpush1.msra.mxu0 0.0
    %1689 = vmatprep.subr.mxu0 0.0
    %1690 = vmatpush1.msra.mxu0 %v42
    %1691 = vmatprep.subr.mxu0 0.0
    %1692 = vmatpush1.msra.mxu0 %v41
    %1693 = vmatprep.subr.mxu0 0.0
    %1694 = vmatpush1.msra.mxu0 %v40
    %1695 = vmatprep.subr.mxu0 0.0
    %1696 = vmatpush1.msra.mxu0 %v39
    %1697 = vmatprep.subr.mxu0 0.0
    %1698 = vmatpush2.msra.mxu0 0.0
    %1699 = vmatprep.subr.mxu0 0.0
    %1700 = vmatpush2.msra.mxu0 0.0
    %1701 = vmatprep.subr.mxu0 0.0
    %1702 = vmatpush2.msra.mxu0 0.0
    %1703 = vmatprep.subr.mxu0 0.0
    %1704 = vmatpush2.msra.mxu0 0.0
    %1705 = vmatprep.subr.mxu0 0.0
    %1706 = vmatpush2.msra.mxu0 0.0
    %1707 = vmatprep.subr.mxu0 0.0
    %1708 = vmatpush2.msra.mxu0 0.0
    %1709 = vmatprep.subr.mxu0 0.0
    %1710 = vmatpush2.msra.mxu0 0.0
    %1711 = vmatprep.subr.mxu0 0.0
    %1712 = vmatpush2.msra.mxu0 0.0
    %1713 = vmatprep.subr.mxu0 0.0
    %1714 = vmatpush2.msra.mxu0 0.0
    %1715 = vmatprep.subr.mxu0 0.0
    %1716 = vmatpush2.msra.mxu0 0.0
    %1717 = vmatprep.subr.mxu0 0.0
    %1718 = vmatpush2.msra.mxu0 0.0
    %1719 = vmatprep.subr.mxu0 0.0
    %1720 = vmatpush2.msra.mxu0 0.0
    %1721 = vmatprep.subr.mxu0 0.0
    %1722 = vmatpush2.msra.mxu0 0.0
    %1723 = vmatprep.subr.mxu0 0.0
    %1724 = vmatpush2.msra.mxu0 0.0
    %1725 = vmatprep.subr.mxu0 0.0
    %1726 = vmatpush2.msra.mxu0 0.0
    %1727 = vmatprep.subr.mxu0 0.0
    %1728 = vmatpush2.msra.mxu0 0.0
    %1729 = vmatprep.mubr.f32.mxu0 0.0
    %1730 = vmatmul.mubr.f32.gmra.mxu0 %v1663
    %v1731 = vpop.f32.mrf.mxu0
    %v1732 = vadd.f32 0.0, %v1731
    %v1733 = vpop.f32.mrf.mxu0
    %1734 = vdwg.mxu0
    %v1735 = vadd.f32 %v206, %v1633
    %v1736 = vmul.f32 %v57, %v1735
    %v1737 = vtanh.pop %v1736
    %v1738 = vmul.f32 %v57, %v1737
    %v1739 = vadd.f32 %v1738, %v62
    %v1740 = vmul.f32 %v1739, %v1554
    %1742 = vrot.lane.b32.xlu0 %v1739, 64
    %v1743 = vpop.permute.xlu0 %1742
    %v1745 = vmul.f32 %v1739, %v1743
    %1747 = vrot.lane.b32.xlu0 %v1745, 32
    %v1748 = vpop.permute.xlu0 %1747
    %v1750 = vadd.f32 %v1740, %v1748
    %v1751 = vtanh.pop %v1750
    %1753 = vrot.lane.b32.xlu0 %v1751, 64
    %v1754 = vpop.permute.xlu0 %1753
    %v1756 = vmul.f32 %v1739, %v1754
    %1758 = vrot.lane.b32.xlu0 %v1756, 32
    %v1759 = vpop.permute.xlu0 %1758
    %v1760 = vsel %vm79, %v1759, 0
    %1762 = vmatprep.subr.mxu0 0.0
    %1763 = vmatpush1.msra.mxu0 0.0
    %1764 = vmatprep.subr.mxu0 0.0
    %1765 = vmatpush1.msra.mxu0 0.0
    %1766 = vmatprep.subr.mxu0 0.0
    %1767 = vmatpush1.msra.mxu0 0.0
    %1768 = vmatprep.subr.mxu0 0.0
    %1769 = vmatpush1.msra.mxu0 0.0
    %1770 = vmatprep.subr.mxu0 0.0
    %1771 = vmatpush1.msra.mxu0 0.0
    %1772 = vmatprep.subr.mxu0 0.0
    %1773 = vmatpush1.msra.mxu0 0.0
    %1774 = vmatprep.subr.mxu0 0.0
    %1775 = vmatpush1.msra.mxu0 0.0
    %1776 = vmatprep.subr.mxu0 0.0
    %1777 = vmatpush1.msra.mxu0 0.0
    %1778 = vmatprep.subr.mxu0 0.0
    %1779 = vmatpush1.msra.mxu0 0.0
    %1780 = vmatprep.subr.mxu0 0.0
    %1781 = vmatpush1.msra.mxu0 0.0
    %1782 = vmatprep.subr.mxu0 0.0
    %1783 = vmatpush1.msra.mxu0 0.0
    %1784 = vmatprep.subr.mxu0 0.0
    %1785 = vmatpush1.msra.mxu0 0.0
    %1786 = vmatprep.subr.mxu0 %v38
    %1787 = vmatpush1.msra.mxu0 %v37
    %1788 = vmatprep.subr.mxu0 %v36
    %1789 = vmatpush1.msra.mxu0 %v35
    %1790 = vmatprep.subr.mxu0 %v34
    %1791 = vmatpush1.msra.mxu0 %v33
    %1792 = vmatprep.subr.mxu0 %v32
    %1793 = vmatpush1.msra.mxu0 %v31
    %1794 = vmatprep.subr.mxu0 0.0
    %1795 = vmatpush2.msra.mxu0 0.0
    %1796 = vmatprep.subr.mxu0 0.0
    %1797 = vmatpush2.msra.mxu0 0.0
    %1798 = vmatprep.subr.mxu0 0.0
    %1799 = vmatpush2.msra.mxu0 0.0
    %1800 = vmatprep.subr.mxu0 0.0
    %1801 = vmatpush2.msra.mxu0 0.0
    %1802 = vmatprep.subr.mxu0 0.0
    %1803 = vmatpush2.msra.mxu0 0.0
    %1804 = vmatprep.subr.mxu0 0.0
    %1805 = vmatpush2.msra.mxu0 0.0
    %1806 = vmatprep.subr.mxu0 0.0
    %1807 = vmatpush2.msra.mxu0 0.0
    %1808 = vmatprep.subr.mxu0 0.0
    %1809 = vmatpush2.msra.mxu0 0.0
    %1810 = vmatprep.subr.mxu0 0.0
    %1811 = vmatpush2.msra.mxu0 0.0
    %1812 = vmatprep.subr.mxu0 0.0
    %1813 = vmatpush2.msra.mxu0 0.0
    %1814 = vmatprep.subr.mxu0 0.0
    %1815 = vmatpush2.msra.mxu0 0.0
    %1816 = vmatprep.subr.mxu0 0.0
    %1817 = vmatpush2.msra.mxu0 0.0
    %1818 = vmatprep.subr.mxu0 0.0
    %1819 = vmatpush2.msra.mxu0 0.0
    %1820 = vmatprep.subr.mxu0 0.0
    %1821 = vmatpush2.msra.mxu0 0.0
    %1822 = vmatprep.subr.mxu0 0.0
    %1823 = vmatpush2.msra.mxu0 0.0
    %1824 = vmatprep.subr.mxu0 0.0
    %1825 = vmatpush2.msra.mxu0 0.0
    %1826 = vmatprep.mubr.f32.mxu0 0.0
    %1827 = vmatmul.mubr.f32.gmra.mxu0 %v1760
    %v1828 = vpop.f32.mrf.mxu0
    %v1829 = vpop.f32.mrf.mxu0
    %v1830 = vadd.f32 0.0, %v1829
    %1831 = vdwg.mxu0
    %v1832 = vadd.f32 %v1830, %v1732
    %v1833 = vadd.f32 %v1832, %v52
    %v1834 = vmul.f32 %v57, %v1833
    %v1835 = vtanh.pop %v1834
    %v1836 = vmul.f32 %v57, %v1835
    %v1837 = vadd.f32 %v1836, %v62
    %v1838 = vmul.f32 %v1837, %v1653
    %1840 = vrot.lane.b32.xlu0 %v1837, 64
    %v1841 = vpop.permute.xlu0 %1840
    %v1843 = vmul.f32 %v1837, %v1841
    %1845 = vrot.lane.b32.xlu0 %v1843, 32
    %v1846 = vpop.permute.xlu0 %1845
    %v1848 = vadd.f32 %v1838, %v1846
    %v1849 = vtanh.pop %v1848
    %1851 = vrot.lane.b32.xlu0 %v1849, 64
    %v1852 = vpop.permute.xlu0 %1851
    %v1854 = vmul.f32 %v1837, %v1852
    %v1855 = vld [vmem:[#allocation2] sm:$0xff]
    %v1856 = vld [vmem:[#allocation2 + $0x8] sm:$0xff]
    %v1857 = vld [vmem:[#allocation2 + $0x10] sm:$0xff]
    %v1858 = vld [vmem:[#allocation2 + $0x18] sm:$0xff]
    %v1859 = vld [vmem:[#allocation2 + $0x20] sm:$0xff]
    %v1860 = vld [vmem:[#allocation2 + $0x28] sm:$0xff]
    %v1861 = vld [vmem:[#allocation2 + $0x30] sm:$0xff]
    %v1862 = vld [vmem:[#allocation2 + $0x3a] sm:$0x1]
    %v1863 = vld [vmem:[#allocation2 + $0x3b] sm:$0x1]
    %v1864 = vld [vmem:[#allocation2 + $0x3c] sm:$0x1]
    %v1865 = vlaneseq
    %v1866 = vshrl.u32 %v1865, 7
    %v1867 = vsub.s32 0, %v1866
    %v1868 = vrot.slane %v1862, %v1867
    %1870 = vrot.lane.b32.xlu0 %v1854, 32
    %v1871 = vpop.permute.xlu0 %1870
    %v1872 = vsel %vm79, %v1871, 0
    %1874 = vmatprep.subr.mxu0 0.0
    %1875 = vmatpush1.msra.mxu0 0.0
    %1876 = vmatprep.subr.mxu0 0.0
    %1877 = vmatpush1.msra.mxu0 0.0
    %1878 = vmatprep.subr.mxu0 0.0
    %1879 = vmatpush1.msra.mxu0 0.0
    %1880 = vmatprep.subr.mxu0 0.0
    %1881 = vmatpush1.msra.mxu0 0.0
    %1882 = vmatprep.subr.mxu0 0.0
    %1883 = vmatpush1.msra.mxu0 0.0
    %1884 = vmatprep.subr.mxu0 0.0
    %1885 = vmatpush1.msra.mxu0 0.0
    %1886 = vmatprep.subr.mxu0 0.0
    %1887 = vmatpush1.msra.mxu0 0.0
    %1888 = vmatprep.subr.mxu0 0.0
    %1889 = vmatpush1.msra.mxu0 0.0
    %1890 = vmatprep.subr.mxu0 0.0
    %1891 = vmatpush1.msra.mxu0 0.0
    %1892 = vmatprep.subr.mxu0 0.0
    %1893 = vmatpush1.msra.mxu0 0.0
    %1894 = vmatprep.subr.mxu0 0.0
    %1895 = vmatpush1.msra.mxu0 0.0
    %1896 = vmatprep.subr.mxu0 0.0
    %1897 = vmatpush1.msra.mxu0 0.0
    %1898 = vmatprep.subr.mxu0 0.0
    %1899 = vmatpush1.msra.mxu0 %v1858
    %1900 = vmatprep.subr.mxu0 0.0
    %1901 = vmatpush1.msra.mxu0 %v1857
    %1902 = vmatprep.subr.mxu0 0.0
    %1903 = vmatpush1.msra.mxu0 %v1856
    %1904 = vmatprep.subr.mxu0 0.0
    %1905 = vmatpush1.msra.mxu0 %v1855
    %1906 = vmatprep.subr.mxu0 0.0
    %1907 = vmatpush2.msra.mxu0 0.0
    %1908 = vmatprep.subr.mxu0 0.0
    %1909 = vmatpush2.msra.mxu0 0.0
    %1910 = vmatprep.subr.mxu0 0.0
    %1911 = vmatpush2.msra.mxu0 0.0
    %1912 = vmatprep.subr.mxu0 0.0
    %1913 = vmatpush2.msra.mxu0 0.0
    %1914 = vmatprep.subr.mxu0 0.0
    %1915 = vmatpush2.msra.mxu0 0.0
    %1916 = vmatprep.subr.mxu0 0.0
    %1917 = vmatpush2.msra.mxu0 0.0
    %1918 = vmatprep.subr.mxu0 0.0
    %1919 = vmatpush2.msra.mxu0 0.0
    %1920 = vmatprep.subr.mxu0 0.0
    %1921 = vmatpush2.msra.mxu0 0.0
    %1922 = vmatprep.subr.mxu0 0.0
    %1923 = vmatpush2.msra.mxu0 0.0
    %1924 = vmatprep.subr.mxu0 0.0
    %1925 = vmatpush2.msra.mxu0 0.0
    %1926 = vmatprep.subr.mxu0 0.0
    %1927 = vmatpush2.msra.mxu0 0.0
    %1928 = vmatprep.subr.mxu0 0.0
    %1929 = vmatpush2.msra.mxu0 0.0
    %1930 = vmatprep.subr.mxu0 0.0
    %1931 = vmatpush2.msra.mxu0 0.0
    %1932 = vmatprep.subr.mxu0 0.0
    %1933 = vmatpush2.msra.mxu0 0.0
    %1934 = vmatprep.subr.mxu0 0.0
    %1935 = vmatpush2.msra.mxu0 0.0
    %1936 = vmatprep.subr.mxu0 0.0
    %1937 = vmatpush2.msra.mxu0 0.0
    %1938 = vmatprep.mubr.f32.mxu0 0.0
    %1939 = vmatmul.mubr.f32.gmra.mxu0 %v1872
    %v1940 = vpop.f32.mrf.mxu0
    %v1941 = vadd.f32 %v1868, %v1940
    %v1942 = vpop.f32.mrf.mxu0
    %1943 = vdwg.mxu0
    %v1944 = vmax.f32 %v1941, 0.0
    %v1945 = vlaneseq
    %v1946 = vshrl.u32 %v1945, 7
    %v1947 = vsub.s32 0, %v1946
    %v1948 = vrot.slane %v1863, %v1947
    %vm1949 = vcmask 130048
    %v1951 = vsel %vm1949, %v1944, 0
    %1953 = vmatprep.subr.mxu0 0.0
    %1954 = vmatpush1.msra.mxu0 0.0
    %1955 = vmatprep.subr.mxu0 0.0
    %1956 = vmatpush1.msra.mxu0 0.0
    %1957 = vmatprep.subr.mxu0 0.0
    %1958 = vmatpush1.msra.mxu0 0.0
    %1959 = vmatprep.subr.mxu0 0.0
    %1960 = vmatpush1.msra.mxu0 0.0
    %1961 = vmatprep.subr.mxu0 0.0
    %1962 = vmatpush1.msra.mxu0 0.0
    %1963 = vmatprep.subr.mxu0 0.0
    %1964 = vmatpush1.msra.mxu0 0.0
    %1965 = vmatprep.subr.mxu0 0.0
    %1966 = vmatpush1.msra.mxu0 0.0
    %1967 = vmatprep.subr.mxu0 0.0
    %1968 = vmatpush1.msra.mxu0 0.0
    %1969 = vmatprep.subr.mxu0 0.0
    %1970 = vmatpush1.msra.mxu0 0.0
    %1971 = vmatprep.subr.mxu0 0.0
    %1972 = vmatpush1.msra.mxu0 0.0
    %1973 = vmatprep.subr.mxu0 0.0
    %1974 = vmatpush1.msra.mxu0 0.0
    %1975 = vmatprep.subr.mxu0 0.0
    %1976 = vmatpush1.msra.mxu0 0.0
    %1977 = vmatprep.subr.mxu0 0.0
    %1978 = vmatpush1.msra.mxu0 0.0
    %1979 = vmatprep.subr.mxu0 0.0
    %1980 = vmatpush1.msra.mxu0 0.0
    %1981 = vmatprep.subr.mxu0 0.0
    %1982 = vmatpush1.msra.mxu0 %v1860
    %1983 = vmatprep.subr.mxu0 0.0
    %1984 = vmatpush1.msra.mxu0 %v1859
    %1985 = vmatprep.subr.mxu0 0.0
    %1986 = vmatpush2.msra.mxu0 0.0
    %1987 = vmatprep.subr.mxu0 0.0
    %1988 = vmatpush2.msra.mxu0 0.0
    %1989 = vmatprep.subr.mxu0 0.0
    %1990 = vmatpush2.msra.mxu0 0.0
    %1991 = vmatprep.subr.mxu0 0.0
    %1992 = vmatpush2.msra.mxu0 0.0
    %1993 = vmatprep.subr.mxu0 0.0
    %1994 = vmatpush2.msra.mxu0 0.0
    %1995 = vmatprep.subr.mxu0 0.0
    %1996 = vmatpush2.msra.mxu0 0.0
    %1997 = vmatprep.subr.mxu0 0.0
    %1998 = vmatpush2.msra.mxu0 0.0
    %1999 = vmatprep.subr.mxu0 0.0
    %2000 = vmatpush2.msra.mxu0 0.0
    %2001 = vmatprep.subr.mxu0 0.0
    %2002 = vmatpush2.msra.mxu0 0.0
    %2003 = vmatprep.subr.mxu0 0.0
    %2004 = vmatpush2.msra.mxu0 0.0
    %2005 = vmatprep.subr.mxu0 0.0
    %2006 = vmatpush2.msra.mxu0 0.0
    %2007 = vmatprep.subr.mxu0 0.0
    %2008 = vmatpush2.msra.mxu0 0.0
    %2009 = vmatprep.subr.mxu0 0.0
    %2010 = vmatpush2.msra.mxu0 0.0
    %2011 = vmatprep.subr.mxu0 0.0
    %2012 = vmatpush2.msra.mxu0 0.0
    %2013 = vmatprep.subr.mxu0 0.0
    %2014 = vmatpush2.msra.mxu0 0.0
    %2015 = vmatprep.subr.mxu0 0.0
    %2016 = vmatpush2.msra.mxu0 0.0
    %2017 = vmatprep.mubr.f32.mxu0 0.0
    %2018 = vmatmul.mubr.f32.gmra.mxu0 %v1951
    %v2019 = vpop.f32.mrf.mxu0
    %v2020 = vadd.f32 %v1948, %v2019
    %v2021 = vpop.f32.mrf.mxu0
    %2022 = vdwg.mxu0
    %v2023 = vmax.f32 %v2020, 0.0
    %v2024 = vlaneseq
    %v2025 = vshrl.u32 %v2024, 7
    %v2026 = vsub.s32 0, %v2025
    %v2027 = vrot.slane %v1864, %v2026
    %vm2028 = vcmask 64512
    %v2030 = vsel %vm2028, %v2023, 0
    %2032 = vmatprep.subr.mxu0 0.0
    %2033 = vmatpush1.msra.mxu0 0.0
    %2034 = vmatprep.subr.mxu0 0.0
    %2035 = vmatpush1.msra.mxu0 0.0
    %2036 = vmatprep.subr.mxu0 0.0
    %2037 = vmatpush1.msra.mxu0 0.0
    %2038 = vmatprep.subr.mxu0 0.0
    %2039 = vmatpush1.msra.mxu0 0.0
    %2040 = vmatprep.subr.mxu0 0.0
    %2041 = vmatpush1.msra.mxu0 0.0
    %2042 = vmatprep.subr.mxu0 0.0
    %2043 = vmatpush1.msra.mxu0 0.0
    %2044 = vmatprep.subr.mxu0 0.0
    %2045 = vmatpush1.msra.mxu0 0.0
    %2046 = vmatprep.subr.mxu0 0.0
    %2047 = vmatpush1.msra.mxu0 0.0
    %2048 = vmatprep.subr.mxu0 0.0
    %2049 = vmatpush1.msra.mxu0 0.0
    %2050 = vmatprep.subr.mxu0 0.0
    %2051 = vmatpush1.msra.mxu0 0.0
    %2052 = vmatprep.subr.mxu0 0.0
    %2053 = vmatpush1.msra.mxu0 0.0
    %2054 = vmatprep.subr.mxu0 0.0
    %2055 = vmatpush1.msra.mxu0 0.0
    %2056 = vmatprep.subr.mxu0 0.0
    %2057 = vmatpush1.msra.mxu0 0.0
    %2058 = vmatprep.subr.mxu0 0.0
    %2059 = vmatpush1.msra.mxu0 0.0
    %2060 = vmatprep.subr.mxu0 0.0
    %2061 = vmatpush1.msra.mxu0 0.0
    %2062 = vmatprep.subr.mxu0 0.0
    %2063 = vmatpush1.msra.mxu0 %v1861
    %2064 = vmatprep.subr.mxu0 0.0
    %2065 = vmatpush2.msra.mxu0 0.0
    %2066 = vmatprep.subr.mxu0 0.0
    %2067 = vmatpush2.msra.mxu0 0.0
    %2068 = vmatprep.subr.mxu0 0.0
    %2069 = vmatpush2.msra.mxu0 0.0
    %2070 = vmatprep.subr.mxu0 0.0
    %2071 = vmatpush2.msra.mxu0 0.0
    %2072 = vmatprep.subr.mxu0 0.0
    %2073 = vmatpush2.msra.mxu0 0.0
    %2074 = vmatprep.subr.mxu0 0.0
    %2075 = vmatpush2.msra.mxu0 0.0
    %2076 = vmatprep.subr.mxu0 0.0
    %2077 = vmatpush2.msra.mxu0 0.0
    %2078 = vmatprep.subr.mxu0 0.0
    %2079 = vmatpush2.msra.mxu0 0.0
    %2080 = vmatprep.subr.mxu0 0.0
    %2081 = vmatpush2.msra.mxu0 0.0
    %2082 = vmatprep.subr.mxu0 0.0
    %2083 = vmatpush2.msra.mxu0 0.0
    %2084 = vmatprep.subr.mxu0 0.0
    %2085 = vmatpush2.msra.mxu0 0.0
    %2086 = vmatprep.subr.mxu0 0.0
    %2087 = vmatpush2.msra.mxu0 0.0
    %2088 = vmatprep.subr.mxu0 0.0
    %2089 = vmatpush2.msra.mxu0 0.0
    %2090 = vmatprep.subr.mxu0 0.0
    %2091 = vmatpush2.msra.mxu0 0.0
    %2092 = vmatprep.subr.mxu0 0.0
    %2093 = vmatpush2.msra.mxu0 0.0
    %2094 = vmatprep.subr.mxu0 0.0
    %2095 = vmatpush2.msra.mxu0 0.0
    %2096 = vmatprep.mubr.f32.mxu0 0.0
    %2097 = vmatmul.mubr.f32.gmra.mxu0 %v2030
    %v2098 = vpop.f32.mrf.mxu0
    %v2099 = vadd.f32 %v2027, %v2098
    %v2100 = vpop.f32.mrf.mxu0
    %2101 = vdwg.mxu0
    %2102 = vst [vmem:[%s4] sm:$0xff] %v2099
    // Predicated region
    $region22: #{_lstm_forward.1} parent=1 // pred_check
      _
    $region23: #{_lstm_forward.1} parent=1 // pred_check_branch
      %2104 = sbr.rel (0) target = $region25
    $region24: #{_lstm_forward.1} parent=1 // pred_region
      _
    $region25: #{_lstm_forward.1} parent=1 // pred_fallthru
      _
    // Predicated region
    $region26: #{_lstm_forward.1} parent=1 // pred_check
      _
    $region27: #{_lstm_forward.1} parent=1 // pred_check_branch
      %2106 = sbr.rel (0) target = $region29
    $region28: #{_lstm_forward.1} parent=1 // pred_region
      _
    $region29: #{_lstm_forward.1} parent=1 // pred_fallthru
      _
    %2107 = vsyncpa [#allocation3], 1

</llo_original>
